<compile_context>
chip_gen: v7x
topology: tpu7x:2x2x1
jax: 0.10.0
libtpu: 0.0.40
codegen_flags: <defaults>
</compile_context>

<pallas_src>
import functools
import math

import jax
import jax.numpy as jnp
from jax.experimental import pallas as pl
from jax.experimental.pallas import tpu as pltpu


def _round_up(x, m):
    return ((x + m - 1) // m) * m


def _pad2d(x, rows, cols):
    return jnp.pad(x, ((0, rows - x.shape[0]), (0, cols - x.shape[1])))


def _vmem_and_tiles(tile_m, tile_k):
    """Per-generation defaults: big tiles on 128-MiB-VMEM chips (v5e/v6e), smaller on v7x."""
    try:
        cap = pltpu.get_tpu_info().vmem_capacity_bytes
    except Exception:
        cap = 64 * 1024 * 1024
    if cap >= 96 * 1024 * 1024:            # v5e / v6e: 128 MiB physical VMEM
        dm, dk, lim = 1024, 2048, 100 * 1024 * 1024
    else:                                  # v7x: 64 MiB physical VMEM
        dm, dk, lim = 256, 1024, 48 * 1024 * 1024
    return (dm if tile_m is None else tile_m,
            dk if tile_k is None else tile_k,
            lim)


def _sage_layer_kernel(a_ref, x_ref, x_self_ref, inv_deg_ref,
                       wl_ref, wr_ref, b_ref, o_ref, acc_ref, *, apply_act):
    # a_ref:      [tile_m, tile_k] int8  unnormalized adjacency block (the streamed O(N^2) data)
    # x_ref:      [tile_k, C]      bf16  column tile of features (aggregation source)
    # x_self_ref: [tile_m, C]      bf16  row tile of features (root/self term, revisited over k)
    # inv_deg_ref:[tile_m, 1]      f32   exact 1/in-degree (mean normalization)
    # wl_ref:     [C, F]           bf16  lin_l weight (VMEM resident)
    # wr_ref:     [C, F]           bf16  lin_r weight (VMEM resident)
    # b_ref:      [1, F]           f32   lin_l bias   (VMEM resident)
    # acc_ref:    [tile_m, C]      f32   neighbor-sum accumulator (scratch)
    k = pl.program_id(1)

    @pl.when(k == 0)
    def _():
        acc_ref[...] = jnp.zeros_like(acc_ref)

    # 1-byte adjacency stream; int8 -> bf16 upcast on the VPU; bf16 MXU matmul, f32 accumulate.
    a = a_ref[...].astype(jnp.bfloat16)
    acc_ref[...] += jnp.dot(a, x_ref[...], preferred_element_type=jnp.float32)

    @pl.when(k == pl.num_programs(1) - 1)
    def _():
        # Exact f32 mean normalization applied after the neighbor sum.
        agg = acc_ref[...] * inv_deg_ref[...]
        h = jnp.dot(agg.astype(jnp.bfloat16), wl_ref[...],
                    preferred_element_type=jnp.float32)
        h = h + jnp.dot(x_self_ref[...], wr_ref[...],
                        preferred_element_type=jnp.float32)
        h = h + b_ref[...]
        if apply_act:
            h = jnp.where(h > 0, h, 0.01 * h)   # leaky_relu, PyTorch default slope
        o_ref[...] = h.astype(o_ref.dtype)


def _sage_layer(a, x, inv_deg, wl, wr, b, tile_m, tile_k, *,
                apply_act, out_dtype, vmem_limit_bytes):
    npad = a.shape[0]
    c = x.shape[1]
    f = wl.shape[1]
    grid = (npad // tile_m, npad // tile_k)
    kernel = functools.partial(_sage_layer_kernel, apply_act=apply_act)
    # NOTE: x is passed twice with different BlockSpecs (column tile for aggregation, row
    # tile for the self term).  The self-term stream is O(N*C) bytes -- negligible next to
    # the O(N^2) adjacency stream -- and its index map is constant over k, so it is DMA'd
    # once per row tile.
    return pl.pallas_call(
        kernel,
        out_shape=jax.ShapeDtypeStruct((npad, f), out_dtype),
        grid_spec=pltpu.PrefetchScalarGridSpec(
            num_scalar_prefetch=0,
            grid=grid,
            in_specs=[
                pl.BlockSpec((tile_m, tile_k), lambda i, k: (i, k)),   # A block (int8, streamed)
                pl.BlockSpec((tile_k, c), lambda i, k: (k, 0)),        # X column tile (streamed)
                pl.BlockSpec((tile_m, c), lambda i, k: (i, 0)),        # X row tile (self term)
                pl.BlockSpec((tile_m, 1), lambda i, k: (i, 0)),        # 1/deg (f32)
                pl.BlockSpec((c, f), lambda i, k: (0, 0)),             # W_l (resident)
                pl.BlockSpec((c, f), lambda i, k: (0, 0)),             # W_r (resident)
                pl.BlockSpec((1, f), lambda i, k: (0, 0)),             # bias (resident)
            ],
            out_specs=pl.BlockSpec((tile_m, f), lambda i, k: (i, 0)),
            scratch_shapes=[pltpu.VMEM((tile_m, c), jnp.float32)],
        ),
        compiler_params=pltpu.CompilerParams(
            dimension_semantics=("parallel", "arbitrary"),
            vmem_limit_bytes=vmem_limit_bytes,
        ),
    )(a, x, x, inv_deg, wl, wr, b)


def _prepare_inputs(features, edges2, additional_feature, params,
                    use_additional_channels, tile_m, tile_k):
    if use_additional_channels:
        features = jnp.concatenate([features, additional_feature], axis=1)
    n, c = features.shape
    f = params["w1l"].shape[1]
    o = params["w2l"].shape[1]

    # Lane-dense channel dims (multiples of 128) -> unmasked vector stores.
    cp = _round_up(c, 128)
    fp = _round_up(f, 128)
    op = _round_up(o, 128)

    # int8 adjacency blocks need (32,128)-aligned tiles; 256-aligned M fills the MXU.
    tile_m = max(256, (int(tile_m) // 256) * 256)
    tile_k = max(128, (int(tile_k) // 128) * 128)
    tile_m = min(tile_m, _round_up(n, 256))
    tile_k = min(tile_k, _round_up(n, 128))
    npad = _round_up(n, math.lcm(tile_m, tile_k))

    # Unnormalized 1-byte adjacency built directly at padded shape with a single O(E)
    # scatter; exact f32 in-degree from an O(E) segment-sum.  (int8 edge counts: fine
    # unless a node pair has >127 parallel edges.)
    src = edges2[0].astype(jnp.int32)
    tgt = edges2[1].astype(jnp.int32)
    a = jnp.zeros((npad, npad), jnp.int8).at[tgt, src].add(jnp.int8(1))
    deg = jnp.zeros((npad,), jnp.float32).at[tgt].add(1.0)
    inv_deg = (1.0 / jnp.maximum(deg, 1.0)).reshape(npad, 1)

    x = _pad2d(features, npad, cp).astype(jnp.bfloat16)

    w1l = _pad2d(params["w1l"], cp, fp).astype(jnp.bfloat16)
    w1r = _pad2d(params["w1r"], cp, fp).astype(jnp.bfloat16)
    b1 = _pad2d(params["b1"], 1, fp)                  # stays f32
    w2l = _pad2d(params["w2l"], fp, op).astype(jnp.bfloat16)
    w2r = _pad2d(params["w2r"], fp, op).astype(jnp.bfloat16)
    b2 = _pad2d(params["b2"], 1, op)                  # stays f32
    return a, inv_deg, x, (w1l, w1r, b1), (w2l, w2r, b2), n, o, tile_m, tile_k


def sage_conv_model_forward(features, edges, edges2, edge_features,
                            additional_feature, params,
                            use_additional_channels=False,
                            tile_m=None, tile_k=None, vmem_limit_bytes=None):
    """JAX/Pallas forward mirroring SAGEConvModel.forward (eval mode)."""
    del edges, edge_features  # unused by the PyTorch forward as well
    tm, tk, lim = _vmem_and_tiles(tile_m, tile_k)
    if vmem_limit_bytes is not None:
        lim = vmem_limit_bytes
    a, inv_deg, x, l1, l2, n, o, tm, tk = _prepare_inputs(
        features, edges2, additional_feature, params, use_additional_channels, tm, tk)

    # sage1 -> leaky_relu ; dropout(p=0.7) is identity in eval mode.
    h = _sage_layer(a, x, inv_deg, *l1, tm, tk, apply_act=True,
                    out_dtype=jnp.bfloat16, vmem_limit_bytes=lim)
    # sage2
    out = _sage_layer(a, h, inv_deg, *l2, tm, tk, apply_act=False,
                      out_dtype=jnp.float32, vmem_limit_bytes=lim)
    return out[:n, :o]


def sage_conv_model_reference(features, edges, edges2, edge_features,
                              additional_feature, params,
                              use_additional_channels=False, tile_m=256, tile_k=256):
    """Pure-JAX reference with matching numerics (bf16 storage, f32 accumulation/normalization)."""
    del edges, edge_features
    a, inv_deg, x, l1, l2, n, o, _, _ = _prepare_inputs(
        features, edges2, additional_feature, params, use_additional_channels, tile_m, tile_k)

    def layer(a_, x_, wl, wr, b, act, out_dtype):
        agg = jnp.dot(a_.astype(jnp.bfloat16), x_, preferred_element_type=jnp.float32)
        agg = agg * inv_deg
        h = jnp.dot(agg.astype(jnp.bfloat16), wl, preferred_element_type=jnp.float32)
        h = h + jnp.dot(x_, wr, preferred_element_type=jnp.float32)
        h = h + b
        if act:
            h = jnp.where(h > 0, h, 0.01 * h)
        return h.astype(out_dtype)

    h = layer(a, x, *l1, True, jnp.bfloat16)
    out = layer(a, h, *l2, False, jnp.float32)
    return out[:n, :o]


def init_params(key, in_channels, feature_channels, out_channels):
    """Deterministic parameter init (weights stored [in, out] so the kernel computes x @ W)."""
    ks = jax.random.split(key, 6)
    s1 = 1.0 / jnp.sqrt(in_channels)
    s2 = 1.0 / jnp.sqrt(feature_channels)
    return {
        "w1l": jax.random.uniform(ks[0], (in_channels, feature_channels),
                                  jnp.float32, -s1, s1),
        "w1r": jax.random.uniform(ks[1], (in_channels, feature_channels),
                                  jnp.float32, -s1, s1),
        "b1": jax.random.uniform(ks[2], (1, feature_channels), jnp.float32, -s1, s1),
        "w2l": jax.random.uniform(ks[3], (feature_channels, out_channels),
                                  jnp.float32, -s2, s2),
        "w2r": jax.random.uniform(ks[4], (feature_channels, out_channels),
                                  jnp.float32, -s2, s2),
        "b2": jax.random.uniform(ks[5], (1, out_channels), jnp.float32, -s2, s2),
    }


if __name__ == "__main__":
    # Small shapes consistent with the module's forward; tile_m=tile_k=256 with 600 nodes
    # pads to 768 and exercises a 3x3 (rows, K) grid.
    N_NODES = 600
    IN_CHANNELS = 64
    FEATURE_CHANNELS = 128
    ADDITIONAL_CHANNELS = 20
    OUT_CHANNELS = 3
    N_EDGES = 2048

    key = jax.random.PRNGKey(0)
    k_feat, k_e1, k_e2, k_ef, k_add, k_par = jax.random.split(key, 6)

    features = jax.random.normal(k_feat, (N_NODES, IN_CHANNELS), jnp.float32)
    edges = jax.random.randint(k_e1, (2, N_EDGES), 0, N_NODES, jnp.int32)
    edges2 = jax.random.randint(k_e2, (2, N_EDGES), 0, N_NODES, jnp.int32)
    edge_features = jax.random.normal(k_ef, (N_EDGES, 4), jnp.float32)
    additional_feature = jax.random.normal(
        k_add, (N_NODES, ADDITIONAL_CHANNELS), jnp.float32)

    params = init_params(k_par, IN_CHANNELS, FEATURE_CHANNELS, OUT_CHANNELS)

    out = sage_conv_model_forward(features, edges, edges2, edge_features,
                                  additional_feature, params,
                                  use_additional_channels=False,
                                  tile_m=256, tile_k=256)
    out = jax.block_until_ready(out)

    ref = sage_conv_model_reference(features, edges, edges2, edge_features,
                                    additional_feature, params,
                                    use_additional_channels=False,
                                    tile_m=256, tile_k=256)
    ref = jax.block_until_ready(ref)

    assert out.shape == (N_NODES, OUT_CHANNELS)
    assert jnp.all(jnp.isfinite(out))
    max_err = float(jnp.max(jnp.abs(out - ref)))
    assert jnp.allclose(out, ref, rtol=2e-2, atol=2e-2), max_err
    print("KERNEL_OK")
</pallas_src>

<mosaic_0001>
module attributes {stable_mosaic.version = 11 : i64} {
  func.func @_sage_layer_kernel(%arg0: i32, %arg1: i32, %arg2: memref<256x256xi8, #tpu.memory_space<vmem>>, %arg3: memref<256x128xbf16, #tpu.memory_space<vmem>>, %arg4: memref<256x128xbf16, #tpu.memory_space<vmem>>, %arg5: memref<256x1xf32, #tpu.memory_space<vmem>>, %arg6: memref<128x128xbf16, #tpu.memory_space<vmem>>, %arg7: memref<128x128xbf16, #tpu.memory_space<vmem>>, %arg8: memref<1x128xf32, #tpu.memory_space<vmem>>, %arg9: memref<256x128xbf16, #tpu.memory_space<vmem>>, %arg10: memref<256x128xf32, #tpu.memory_space<vmem>>) attributes {dimension_semantics = [#tpu.dimension_semantics<parallel>, #tpu.dimension_semantics<arbitrary>], iteration_bounds = array<i64: 3, 3>, scalar_prefetch = 0 : i64, scratch_operands = 1 : i64, tpu.core_type = #tpu.core_type<tc>, window_params = [{transform_indices = @transform_0, window_bounds = array<i64: 256, 256>}, {transform_indices = @transform_1, window_bounds = array<i64: 256, 128>}, {transform_indices = @transform_2, window_bounds = array<i64: 256, 128>}, {transform_indices = @transform_3, window_bounds = array<i64: 256, 1>}, {pipeline_mode = #tpu.pipeline_mode<synchronous>, transform_indices = @transform_4, window_bounds = array<i64: 128, 128>}, {pipeline_mode = #tpu.pipeline_mode<synchronous>, transform_indices = @transform_5, window_bounds = array<i64: 128, 128>}, {pipeline_mode = #tpu.pipeline_mode<synchronous>, transform_indices = @transform_6, window_bounds = array<i64: 1, 128>}, {transform_indices = @transform_7, window_bounds = array<i64: 256, 128>}]} {
    %c0_i32 = arith.constant 0 : i32
    %0 = arith.cmpi eq, %arg1, %c0_i32 : i32
    %1 = arith.extui %0 : i1 to i32
    %c0_i32_0 = arith.constant 0 : i32
    %2 = arith.cmpi ne, %1, %c0_i32_0 : i32
    scf.if %2 {
      %cst_9 = arith.constant 0.000000e+00 : f32
      %13 = vector.broadcast %cst_9 : f32 to vector<256x128xf32>
      %c0_10 = arith.constant 0 : index
      %c0_11 = arith.constant 0 : index
      %14 = vector.load %arg10[%c0_10, %c0_11] : memref<256x128xf32, #tpu.memory_space<vmem>>, vector<256x128xf32>
      tpu.vector_store %arg10[%c0_10, %c0_11], %13 {strides = array<i32>} : memref<256x128xf32, #tpu.memory_space<vmem>>, vector<256x128xf32>,
    } else {
    }
    %c0 = arith.constant 0 : index
    %c0_1 = arith.constant 0 : index
    %3 = vector.load %arg2[%c0, %c0_1] : memref<256x256xi8, #tpu.memory_space<vmem>>, vector<256x256xi8>
    %4 = arith.sitofp %3 : vector<256x256xi8> to vector<256x256xbf16>
    %c0_2 = arith.constant 0 : index
    %c0_3 = arith.constant 0 : index
    %5 = vector.load %arg10[%c0_2, %c0_3] : memref<256x128xf32, #tpu.memory_space<vmem>>, vector<256x128xf32>
    %c0_4 = arith.constant 0 : index
    %c0_5 = arith.constant 0 : index
    %6 = vector.load %arg3[%c0_4, %c0_5] : memref<256x128xbf16, #tpu.memory_space<vmem>>, vector<256x128xbf16>
    %cst = arith.constant dense<0.000000e+00> : vector<256x128xf32>
    %7 = tpu.matmul %4, %6, %cst {dimension_numbers = #tpu.dot_dimension_numbers<[1], [0], [0], [1], [0, 0, 1, 1], [], []>} : vector<256x256xbf16>, vector<256x128xbf16>, vector<256x128xf32> -> vector<256x128xf32>
    %8 = arith.addf %5, %7 : vector<256x128xf32>
    %c0_6 = arith.constant 0 : index
    %c0_7 = arith.constant 0 : index
    %9 = vector.load %arg10[%c0_6, %c0_7] : memref<256x128xf32, #tpu.memory_space<vmem>>, vector<256x128xf32>
    tpu.vector_store %arg10[%c0_6, %c0_7], %8 {strides = array<i32>} : memref<256x128xf32, #tpu.memory_space<vmem>>, vector<256x128xf32>,
    %c2_i32 = arith.constant 2 : i32
    %10 = arith.cmpi eq, %arg1, %c2_i32 : i32
    %11 = arith.extui %10 : i1 to i32
    %c0_i32_8 = arith.constant 0 : i32
    %12 = arith.cmpi ne, %11, %c0_i32_8 : i32
    scf.if %12 {
      %c0_9 = arith.constant 0 : index
      %c0_10 = arith.constant 0 : index
      %13 = vector.load %arg10[%c0_9, %c0_10] : memref<256x128xf32, #tpu.memory_space<vmem>>, vector<256x128xf32>
      %c0_11 = arith.constant 0 : index
      %c0_12 = arith.constant 0 : index
      %14 = vector.load %arg5[%c0_11, %c0_12] : memref<256x1xf32, #tpu.memory_space<vmem>>, vector<256x1xf32>
      %15 = vector.broadcast %14 : vector<256x1xf32> to vector<256x128xf32>
      %16 = arith.mulf %13, %15 : vector<256x128xf32>
      %17 = arith.truncf %16 : vector<256x128xf32> to vector<256x128xbf16>
      %c0_13 = arith.constant 0 : index
      %c0_14 = arith.constant 0 : index
      %18 = vector.load %arg6[%c0_13, %c0_14] : memref<128x128xbf16, #tpu.memory_space<vmem>>, vector<128x128xbf16>
      %cst_15 = arith.constant dense<0.000000e+00> : vector<256x128xf32>
      %19 = tpu.matmul %17, %18, %cst_15 {dimension_numbers = #tpu.dot_dimension_numbers<[1], [0], [0], [1], [0, 0, 1, 1], [], []>} : vector<256x128xbf16>, vector<128x128xbf16>, vector<256x128xf32> -> vector<256x128xf32>
      %c0_16 = arith.constant 0 : index
      %c0_17 = arith.constant 0 : index
      %20 = vector.load %arg4[%c0_16, %c0_17] : memref<256x128xbf16, #tpu.memory_space<vmem>>, vector<256x128xbf16>
      %c0_18 = arith.constant 0 : index
      %c0_19 = arith.constant 0 : index
      %21 = vector.load %arg7[%c0_18, %c0_19] : memref<128x128xbf16, #tpu.memory_space<vmem>>, vector<128x128xbf16>
      %cst_20 = arith.constant dense<0.000000e+00> : vector<256x128xf32>
      %22 = tpu.matmul %20, %21, %cst_20 {dimension_numbers = #tpu.dot_dimension_numbers<[1], [0], [0], [1], [0, 0, 1, 1], [], []>} : vector<256x128xbf16>, vector<128x128xbf16>, vector<256x128xf32> -> vector<256x128xf32>
      %23 = arith.addf %19, %22 : vector<256x128xf32>
      %c0_21 = arith.constant 0 : index
      %c0_22 = arith.constant 0 : index
      %24 = vector.load %arg8[%c0_21, %c0_22] : memref<1x128xf32, #tpu.memory_space<vmem>>, vector<1x128xf32>
      %25 = vector.broadcast %24 : vector<1x128xf32> to vector<256x128xf32>
      %26 = arith.addf %23, %25 : vector<256x128xf32>
      %cst_23 = arith.constant 0.000000e+00 : f32
      %27 = vector.broadcast %cst_23 : f32 to vector<256x128xf32>
      %28 = arith.cmpf ogt, %26, %27 : vector<256x128xf32>
      %cst_24 = arith.constant 0.00999999977 : f32
      %29 = vector.broadcast %cst_24 : f32 to vector<256x128xf32>
      %30 = arith.mulf %29, %26 : vector<256x128xf32>
      %31 = arith.select %28, %26, %30 : vector<256x128xi1>, vector<256x128xf32>
      %32 = arith.truncf %31 : vector<256x128xf32> to vector<256x128xbf16>
      %c0_25 = arith.constant 0 : index
      %c0_26 = arith.constant 0 : index
      %33 = vector.load %arg9[%c0_25, %c0_26] : memref<256x128xbf16, #tpu.memory_space<vmem>>, vector<256x128xbf16>
      tpu.vector_store %arg9[%c0_25, %c0_26], %32 {strides = array<i32>} : memref<256x128xbf16, #tpu.memory_space<vmem>>, vector<256x128xbf16>,
    } else {
    }
    return
  }
  func.func @transform_0(%arg0: i32, %arg1: i32) -> (i32, i32) {
    %c0_i32 = arith.constant 0 : i32
    return %arg0, %arg1 : i32, i32
  }
  func.func @transform_1(%arg0: i32, %arg1: i32) -> (i32, i32) {
    %c0_i32 = arith.constant 0 : i32
    %c0_i32_0 = arith.constant 0 : i32
    return %arg1, %c0_i32 : i32, i32
  }
  func.func @transform_2(%arg0: i32, %arg1: i32) -> (i32, i32) {
    %c0_i32 = arith.constant 0 : i32
    %c0_i32_0 = arith.constant 0 : i32
    return %arg0, %c0_i32 : i32, i32
  }
  func.func @transform_3(%arg0: i32, %arg1: i32) -> (i32, i32) {
    %c0_i32 = arith.constant 0 : i32
    %c0_i32_0 = arith.constant 0 : i32
    return %arg0, %c0_i32 : i32, i32
  }
  func.func @transform_4(%arg0: i32, %arg1: i32) -> (i32, i32) {
    %c0_i32 = arith.constant 0 : i32
    %c0_i32_0 = arith.constant 0 : i32
    %c0_i32_1 = arith.constant 0 : i32
    return %c0_i32, %c0_i32_0 : i32, i32
  }
  func.func @transform_5(%arg0: i32, %arg1: i32) -> (i32, i32) {
    %c0_i32 = arith.constant 0 : i32
    %c0_i32_0 = arith.constant 0 : i32
    %c0_i32_1 = arith.constant 0 : i32
    return %c0_i32, %c0_i32_0 : i32, i32
  }
  func.func @transform_6(%arg0: i32, %arg1: i32) -> (i32, i32) {
    %c0_i32 = arith.constant 0 : i32
    %c0_i32_0 = arith.constant 0 : i32
    %c0_i32_1 = arith.constant 0 : i32
    return %c0_i32, %c0_i32_0 : i32, i32
  }
  func.func @transform_7(%arg0: i32, %arg1: i32) -> (i32, i32) {
    %c0_i32 = arith.constant 0 : i32
    %c0_i32_0 = arith.constant 0 : i32
    return %arg0, %c0_i32 : i32, i32
  }
}

</mosaic_0001>

<llo_original>
// kernel: tpu_custom_call.1
$region0: #{tpu_custom_call.1}
  #allocation0 [shape = 'u32[]', space=smem, size = 0x4, offset = 0x4, fixed_abs, tag = 'smem constant byte address 0x4 - core index']
  #allocation1 [shape = 'u32[144,128]{1,0:T(1,128)}', space=vmem, size = 0x12000, scoped, tag = 'internal scratch']
  #allocation2 [shape = 'f32[256,128]{1,0:T(8,128)}', space=vmem, size = 0x20000, scoped, tag = 'scratch operand']
  %s0 = inlined_call_operand.hbm [shape: s8[768,768], index: 0, kind: input, shape index: {}]
  %s1 = inlined_call_operand.vmem [shape: bf16[768,128], index: 1, kind: input, shape index: {}]
  %s2 = inlined_call_operand.vmem [shape: bf16[768,128], index: 2, kind: input, shape index: {}]
  %s3 = inlined_call_operand.vmem [shape: f32[768,1], index: 3, kind: input, shape index: {}]
  %s4 = inlined_call_operand.hbm [shape: bf16[128,128], index: 4, kind: input, shape index: {}]
  %s5 = inlined_call_operand.hbm [shape: bf16[128,128], index: 5, kind: input, shape index: {}]
  %s6 = inlined_call_operand.vmem [shape: f32[1,128], index: 6, kind: input, shape index: {}]
  %s7 = inlined_call_operand.hbm [shape: bf16[768,128], index: 7, kind: output, shape index: {}]
  %s8 = sld [smem:[#allocation0]]
  $region81: #{tpu_custom_call.1} parent=0
    _
  %s10 = ssub.s32 1, %s8
  %s11 = scalar_select 0, %s10, %s8
  $region1: #{tpu_custom_call.1} parent=0
    #allocation3 [shape = 'u8[131072]{0}', space=vmem, size = 0x20000, scoped, tag = 'input window, operand 0']
    #allocation4 [shape = 's32[2]{0}', space=sflag, size = 0x8, scoped, tag = 'scoped memory for tpu_custom_call.1']
    #allocation5 [shape = 's32[2]{0}', space=sflag, size = 0x8, scoped, tag = 'scoped memory for tpu_custom_call.1']
    #allocation6 [shape = 'u8[32768]{0}', space=vmem, size = 0x8000, scoped, tag = 'input window, operand 4, single buffered']
    #allocation7 [shape = 's32[1]{0}', space=sflag, size = 0x4, scoped, tag = 'scoped memory for tpu_custom_call.1']
    #allocation8 [shape = 'u8[32768]{0}', space=vmem, size = 0x8000, scoped, tag = 'input window, operand 5, single buffered']
    #allocation9 [shape = 'u8[131072]{0}', space=vmem, size = 0x20000, scoped, tag = 'output window, operand 0']
    %12 = vsyncpa [#allocation4], 0
    %s13 = scalar_lea.sflag [#allocation4], 1
    %14 = vsyncpa %s13, 0
    %15 = vsyncpa [#allocation7], 0
    %16 = vsyncpa [#allocation5], 0
    %s17 = scalar_lea.sflag [#allocation5], 1
    %18 = vsyncpa %s17, 0
    loop: start=0, step=1, limit=11
    $region2: #{tpu_custom_call.1} parent=1 // loop_pre_header
      _
    $region3: #{tpu_custom_call.1} parent=1 // loop_header
      %s20 = sphi 0, %s24
      %p21 = scmp.ge.s32.totalorder %s20, 11
      %s27 = sphi 0, %s39
      %s28 = sphi 0, %s35
      %s29 = sphi 0, %s27
      %s30 = sphi 0, %s28
      %s31 = sphi 0, %s29
      %s32 = sphi 0, %s30
      %s44 = sphi 0, %s46
      %s47 = sphi 0, %s44
      %s48 = sphi 0, %s47
      %s64 = sphi 0, %s48
      %s70 = sphi 0, %s72
      %s73 = sphi 0, %s70
      %s74 = sphi 0, %s73
      %s90 = sphi 0, %s74
      %s96 = sphi 0, %s98
      %s99 = sphi 0, %s96
      %s100 = sphi 0, %s99
      %s116 = sphi 0, %s100
      %s122 = sphi 0, %s124
      %s125 = sphi 0, %s122
      %s126 = sphi 0, %s125
      %s142 = sphi 0, %s126
      %s146 = sphi 0, %s146
      %s148 = sphi 0, %s146
      %s149 = sphi 0, %s148
      %s163 = sphi 0, %s149
      %s167 = sphi 0, %s167
      %s169 = sphi 0, %s167
      %s170 = sphi 0, %s169
      %s184 = sphi 0, %s170
      %s188 = sphi 0, %s188
      %s190 = sphi 0, %s188
      %s191 = sphi 0, %s190
      %s205 = sphi 0, %s191
      %s211 = sphi 0, %s213
      %s214 = sphi 0, %s211
      %s215 = sphi 0, %s214
      %s231 = sphi 0, %s215
    $region4: #{tpu_custom_call.1} parent=1 // loop_header_branch
      %23 = sbr.rel (%p21) target = $region8
    $region5: #{tpu_custom_call.1} parent=1 // loop_body
      %s25 = ssub.s32 %s20, 1
      %s26 = ssub.s32 %s20, 2
      %s33 = sadd.s32 1, %s28
      %p34 = scmp.ge.s32.totalorder %s33, 3
      %s35 = scalar_select %p34, 0, %s33
      %s36 = sadd.s32 1, %s27
      %s37 = scalar_select %p34, %s36, %s27
      %p38 = scmp.ge.s32.totalorder %s37, 3
      %s39 = scalar_select %p38, 0, %s37
      %s40 = ssub.s32 %s27, %s39
      %s41 = ssub.s32 %s28, %s35
      %s42 = sor.u32 %s40, %s41
      %p43 = scmp.eq.s32.totalorder %s42, 0
      %s45 = sadd.s32 %s44, 1
      %s46 = scalar_select %p43, %s44, %s45
      %p49 = pneg %p43
      %p50 = scmp.eq.s32.totalorder %s20, 8
      %p51 = por %p49, %p50
      %p52 = scmp.ne.s32.totalorder %s44, %s47
      %p53 = scmp.eq.s32.totalorder %s20, 0
      %p54 = por %p52, %p53
      %p55 = scmp.ne.s32.totalorder %s44, %s47
      %p56 = scmp.eq.s32.totalorder %s25, 8
      %p57 = por %p55, %p56
      %p58 = scmp.ne.s32.totalorder %s47, %s48
      %p59 = scmp.eq.s32.totalorder %s25, 0
      %p60 = por %p58, %p59
      %p61 = scmp.ne.s32.totalorder %s47, %s48
      %p62 = scmp.eq.s32.totalorder %s26, 8
      %p63 = por %p61, %p62
      %p65 = scmp.ne.s32.totalorder %s48, %s64
      %p66 = scmp.eq.s32.totalorder %s26, 0
      %p67 = por %p65, %p66
      %s68 = ssub.s32 %s28, %s35
      %p69 = scmp.eq.s32.totalorder %s68, 0
      %s71 = sadd.s32 %s70, 1
      %s72 = scalar_select %p69, %s70, %s71
      %p75 = pneg %p69
      %p76 = scmp.eq.s32.totalorder %s20, 8
      %p77 = por %p75, %p76
      %p78 = scmp.ne.s32.totalorder %s70, %s73
      %p79 = scmp.eq.s32.totalorder %s20, 0
      %p80 = por %p78, %p79
      %p81 = scmp.ne.s32.totalorder %s70, %s73
      %p82 = scmp.eq.s32.totalorder %s25, 8
      %p83 = por %p81, %p82
      %p84 = scmp.ne.s32.totalorder %s73, %s74
      %p85 = scmp.eq.s32.totalorder %s25, 0
      %p86 = por %p84, %p85
      %p87 = scmp.ne.s32.totalorder %s73, %s74
      %p88 = scmp.eq.s32.totalorder %s26, 8
      %p89 = por %p87, %p88
      %p91 = scmp.ne.s32.totalorder %s74, %s90
      %p92 = scmp.eq.s32.totalorder %s26, 0
      %p93 = por %p91, %p92
      %s94 = ssub.s32 %s27, %s39
      %p95 = scmp.eq.s32.totalorder %s94, 0
      %s97 = sadd.s32 %s96, 1
      %s98 = scalar_select %p95, %s96, %s97
      %p101 = pneg %p95
      %p102 = scmp.eq.s32.totalorder %s20, 8
      %p103 = por %p101, %p102
      %p104 = scmp.ne.s32.totalorder %s96, %s99
      %p105 = scmp.eq.s32.totalorder %s20, 0
      %p106 = por %p104, %p105
      %p107 = scmp.ne.s32.totalorder %s96, %s99
      %p108 = scmp.eq.s32.totalorder %s25, 8
      %p109 = por %p107, %p108
      %p110 = scmp.ne.s32.totalorder %s99, %s100
      %p111 = scmp.eq.s32.totalorder %s25, 0
      %p112 = por %p110, %p111
      %p113 = scmp.ne.s32.totalorder %s99, %s100
      %p114 = scmp.eq.s32.totalorder %s26, 8
      %p115 = por %p113, %p114
      %p117 = scmp.ne.s32.totalorder %s100, %s116
      %p118 = scmp.eq.s32.totalorder %s26, 0
      %p119 = por %p117, %p118
      %s120 = ssub.s32 %s27, %s39
      %p121 = scmp.eq.s32.totalorder %s120, 0
      %s123 = sadd.s32 %s122, 1
      %s124 = scalar_select %p121, %s122, %s123
      %p127 = pneg %p121
      %p128 = scmp.eq.s32.totalorder %s20, 8
      %p129 = por %p127, %p128
      %p130 = scmp.ne.s32.totalorder %s122, %s125
      %p131 = scmp.eq.s32.totalorder %s20, 0
      %p132 = por %p130, %p131
      %p133 = scmp.ne.s32.totalorder %s122, %s125
      %p134 = scmp.eq.s32.totalorder %s25, 8
      %p135 = por %p133, %p134
      %p136 = scmp.ne.s32.totalorder %s125, %s126
      %p137 = scmp.eq.s32.totalorder %s25, 0
      %p138 = por %p136, %p137
      %p139 = scmp.ne.s32.totalorder %s125, %s126
      %p140 = scmp.eq.s32.totalorder %s26, 8
      %p141 = por %p139, %p140
      %p143 = scmp.ne.s32.totalorder %s126, %s142
      %p144 = scmp.eq.s32.totalorder %s26, 0
      %p145 = por %p143, %p144
      %s147 = sadd.s32 %s146, 1
      %p150 = scmp.eq.s32.totalorder %s20, 8
      %p151 = scmp.ne.s32.totalorder %s146, %s148
      %p152 = scmp.eq.s32.totalorder %s20, 0
      %p153 = por %p151, %p152
      %p154 = scmp.ne.s32.totalorder %s146, %s148
      %p155 = scmp.eq.s32.totalorder %s25, 8
      %p156 = por %p154, %p155
      %p157 = scmp.ne.s32.totalorder %s148, %s149
      %p158 = scmp.eq.s32.totalorder %s25, 0
      %p159 = por %p157, %p158
      %p160 = scmp.ne.s32.totalorder %s148, %s149
      %p161 = scmp.eq.s32.totalorder %s26, 8
      %p162 = por %p160, %p161
      %p164 = scmp.ne.s32.totalorder %s149, %s163
      %p165 = scmp.eq.s32.totalorder %s26, 0
      %p166 = por %p164, %p165
      %s168 = sadd.s32 %s167, 1
      %p171 = scmp.eq.s32.totalorder %s20, 8
      %p172 = scmp.ne.s32.totalorder %s167, %s169
      %p173 = scmp.eq.s32.totalorder %s20, 0
      %p174 = por %p172, %p173
      %p175 = scmp.ne.s32.totalorder %s167, %s169
      %p176 = scmp.eq.s32.totalorder %s25, 8
      %p177 = por %p175, %p176
      %p178 = scmp.ne.s32.totalorder %s169, %s170
      %p179 = scmp.eq.s32.totalorder %s25, 0
      %p180 = por %p178, %p179
      %p181 = scmp.ne.s32.totalorder %s169, %s170
      %p182 = scmp.eq.s32.totalorder %s26, 8
      %p183 = por %p181, %p182
      %p185 = scmp.ne.s32.totalorder %s170, %s184
      %p186 = scmp.eq.s32.totalorder %s26, 0
      %p187 = por %p185, %p186
      %s189 = sadd.s32 %s188, 1
      %p192 = scmp.eq.s32.totalorder %s20, 8
      %p193 = scmp.ne.s32.totalorder %s188, %s190
      %p194 = scmp.eq.s32.totalorder %s20, 0
      %p195 = por %p193, %p194
      %p196 = scmp.ne.s32.totalorder %s188, %s190
      %p197 = scmp.eq.s32.totalorder %s25, 8
      %p198 = por %p196, %p197
      %p199 = scmp.ne.s32.totalorder %s190, %s191
      %p200 = scmp.eq.s32.totalorder %s25, 0
      %p201 = por %p199, %p200
      %p202 = scmp.ne.s32.totalorder %s190, %s191
      %p203 = scmp.eq.s32.totalorder %s26, 8
      %p204 = por %p202, %p203
      %p206 = scmp.ne.s32.totalorder %s191, %s205
      %p207 = scmp.eq.s32.totalorder %s26, 0
      %p208 = por %p206, %p207
      %s209 = ssub.s32 %s27, %s39
      %p210 = scmp.eq.s32.totalorder %s209, 0
      %s212 = sadd.s32 %s211, 1
      %s213 = scalar_select %p210, %s211, %s212
      %p216 = pneg %p210
      %p217 = scmp.eq.s32.totalorder %s20, 8
      %p218 = por %p216, %p217
      %p219 = scmp.ne.s32.totalorder %s211, %s214
      %p220 = scmp.eq.s32.totalorder %s20, 0
      %p221 = por %p219, %p220
      %p222 = scmp.ne.s32.totalorder %s211, %s214
      %p223 = scmp.eq.s32.totalorder %s25, 8
      %p224 = por %p222, %p223
      %p225 = scmp.ne.s32.totalorder %s214, %s215
      %p226 = scmp.eq.s32.totalorder %s25, 0
      %p227 = por %p225, %p226
      %p228 = scmp.ne.s32.totalorder %s214, %s215
      %p229 = scmp.eq.s32.totalorder %s26, 8
      %p230 = por %p228, %p229
      %p232 = scmp.ne.s32.totalorder %s215, %s231
      %p233 = scmp.eq.s32.totalorder %s26, 0
      %p234 = por %p232, %p233
      %p235 = scmp.le.s32.totalorder 1, %s20
      %p236 = scmp.lt.s32.totalorder %s20, 10
      %p237 = pnand %p235, %p236
      %p238 = pneg %p237
      // Predicated region
      $region9: #{tpu_custom_call.1} parent=5 // pred_check
        _
      $region10: #{tpu_custom_call.1} parent=5 // pred_check_branch
        %240 = sbr.rel (%p237) target = $region12
      $region11: #{tpu_custom_call.1} parent=5 // pred_region
        %s241 = ssub.s32 %s20, 1
        // Predicated region
        $region13: #{tpu_custom_call.1} parent=11 // pred_check
          %p242 = pneg %p159
        $region14: #{tpu_custom_call.1} parent=11 // pred_check_branch
          %244 = sbr.rel (%p242) target = $region16
        $region15: #{tpu_custom_call.1} parent=11 // pred_region
          %s246 = ssub.s32 1024, 1024
          %247 = vsyncadd [#allocation7], %s246
          %s248 = sshll.u32 [#allocation6], 4
          %s249 = int_to_ptr.vmem [resolvable:$true] %s248
          %254 = dma.hbm_to_vmem [thread:$0]  %s4, 1024, %s249, [#allocation7], 64, 64, 4
        $region16: #{tpu_custom_call.1} parent=11 // pred_fallthru
          _
        // Predicated region
        $region17: #{tpu_custom_call.1} parent=11 // pred_check
          %p255 = pneg %p180
        $region18: #{tpu_custom_call.1} parent=11 // pred_check_branch
          %257 = sbr.rel (%p255) target = $region20
        $region19: #{tpu_custom_call.1} parent=11 // pred_region
          %s259 = ssub.s32 1024, 1024
          %260 = vsyncadd [#allocation7], %s259
          %s261 = sshll.u32 [#allocation8], 4
          %s262 = int_to_ptr.vmem [resolvable:$true] %s261
          %267 = dma.hbm_to_vmem [thread:$0]  %s5, 1024, %s262, [#allocation7], 64, 64, 4
        $region20: #{tpu_custom_call.1} parent=11 // pred_fallthru
          _
        // Predicated region
        $region21: #{tpu_custom_call.1} parent=11 // pred_check
          %p268 = pneg %p201
        $region22: #{tpu_custom_call.1} parent=11 // pred_check_branch
          %270 = sbr.rel (%p268) target = $region24
        $region23: #{tpu_custom_call.1} parent=11 // pred_region
          _
        $region24: #{tpu_custom_call.1} parent=11 // pred_fallthru
          _
      $region12: #{tpu_custom_call.1} parent=5 // pred_fallthru
        _
      %p271 = scmp.lt.s32.totalorder %s20, 9
      // Predicated region
      $region25: #{tpu_custom_call.1} parent=5 // pred_check
        %p272 = pneg %p271
      $region26: #{tpu_custom_call.1} parent=5 // pred_check_branch
        %274 = sbr.rel (%p272) target = $region28
      $region27: #{tpu_custom_call.1} parent=5 // pred_region
        // Predicated region
        $region29: #{tpu_custom_call.1} parent=27 // pred_check
          %p275 = pneg %p54
        $region30: #{tpu_custom_call.1} parent=27 // pred_check_branch
          %277 = sbr.rel (%p275) target = $region32
        $region31: #{tpu_custom_call.1} parent=27 // pred_region
          %s278 = sand.u32 %s44, 1
          %s279 = scalar_lea.sflag [#allocation4], %s278
          %s280 = sand.u32 %s44, 1
          %s281 = smul.addr %s280, 128
          %s282 = scalar_lea.vmem [#allocation3], %s281
          %s283 = smul.u32 8, %s27
          %s284 = smul.u32 2, %s28
          %s286 = ssub.s32 2048, 2048
          %287 = vsyncadd %s279, %s286
          %s288 = smul.addr %s283, 6
          %s289 = sadd.s32 %s284, %s288
          %s290 = smul.addr %s289, 128
          %s291 = scalar_lea.hbm %s0, %s290
          %s292 = sshll.u32 %s282, 4
          %s293 = int_to_ptr.vmem [resolvable:$true] %s292
          %298 = dma.hbm_to_vmem [thread:$0]  %s291, 2048, %s293, %s279, 768, 256, 16
        $region32: #{tpu_custom_call.1} parent=27 // pred_fallthru
          _
        // Predicated region
        $region33: #{tpu_custom_call.1} parent=27 // pred_check
          %p299 = pneg %p80
        $region34: #{tpu_custom_call.1} parent=27 // pred_check_branch
          %301 = sbr.rel (%p299) target = $region36
        $region35: #{tpu_custom_call.1} parent=27 // pred_region
          %s302 = smul.u32 32, %s28
          %p303 = scmp.lt.s32.totalorder %s302, 95
          %s304 = scalar_select %p303, %s302, 95
          %s305 = smul.addr %s304, 4
          %s306 = scalar_lea.vmem %s1, %s305
          %s307 = smul.u32 32, %s28
        $region36: #{tpu_custom_call.1} parent=27 // pred_fallthru
          _
        // Predicated region
        $region37: #{tpu_custom_call.1} parent=27 // pred_check
          %p308 = pneg %p106
        $region38: #{tpu_custom_call.1} parent=27 // pred_check_branch
          %310 = sbr.rel (%p308) target = $region40
        $region39: #{tpu_custom_call.1} parent=27 // pred_region
          %s311 = smul.u32 32, %s27
          %p312 = scmp.lt.s32.totalorder %s311, 95
          %s313 = scalar_select %p312, %s311, 95
          %s314 = smul.addr %s313, 4
          %s315 = scalar_lea.vmem %s2, %s314
          %s316 = smul.u32 32, %s27
        $region40: #{tpu_custom_call.1} parent=27 // pred_fallthru
          _
        // Predicated region
        $region41: #{tpu_custom_call.1} parent=27 // pred_check
          %p317 = pneg %p132
        $region42: #{tpu_custom_call.1} parent=27 // pred_check_branch
          %319 = sbr.rel (%p317) target = $region44
        $region43: #{tpu_custom_call.1} parent=27 // pred_region
          %s320 = smul.u32 32, %s27
          %p321 = scmp.lt.s32.totalorder %s320, 95
          %s322 = scalar_select %p321, %s320, 95
          %s323 = smul.addr %s322, 8
          %s324 = scalar_lea.vmem %s3, %s323
          %s325 = smul.u32 32, %s27
        $region44: #{tpu_custom_call.1} parent=27 // pred_fallthru
          _
      $region28: #{tpu_custom_call.1} parent=5 // pred_fallthru
        _
      %p326 = scmp.le.s32.totalorder 1, %s20
      %p327 = scmp.lt.s32.totalorder %s20, 10
      %p328 = pnand %p326, %p327
      %p329 = pneg %p328
      // Predicated region
      $region45: #{tpu_custom_call.1} parent=5 // pred_check
        _
      $region46: #{tpu_custom_call.1} parent=5 // pred_check_branch
        %331 = sbr.rel (%p328) target = $region48
      $region47: #{tpu_custom_call.1} parent=5 // pred_region
        %s332 = ssub.s32 %s20, 1
        %s333 = sand.u32 %s47, 1
        %s334 = scalar_lea.sflag [#allocation4], %s333
        %s335 = sand.u32 %s47, 1
        %s336 = smul.addr %s335, 128
        %s337 = scalar_lea.vmem [#allocation3], %s336
        // Predicated region
        $region49: #{tpu_custom_call.1} parent=47 // pred_check
          %p338 = pneg %p60
        $region50: #{tpu_custom_call.1} parent=47 // pred_check_branch
          %340 = sbr.rel (%p338) target = $region52
        $region51: #{tpu_custom_call.1} parent=47 // pred_region
          %341 = dma.done %s334, 2048
        $region52: #{tpu_custom_call.1} parent=47 // pred_fallthru
          _
        // Predicated region
        $region53: #{tpu_custom_call.1} parent=47 // pred_check
          %p342 = pneg %p159
        $region54: #{tpu_custom_call.1} parent=47 // pred_check_branch
          %344 = sbr.rel (%p342) target = $region56
        $region55: #{tpu_custom_call.1} parent=47 // pred_region
          %345 = dma.done [#allocation7], 1024
        $region56: #{tpu_custom_call.1} parent=47 // pred_fallthru
          _
        // Predicated region
        $region57: #{tpu_custom_call.1} parent=47 // pred_check
          %p346 = pneg %p180
        $region58: #{tpu_custom_call.1} parent=47 // pred_check_branch
          %348 = sbr.rel (%p346) target = $region60
        $region59: #{tpu_custom_call.1} parent=47 // pred_region
          %349 = dma.done [#allocation7], 1024
        $region60: #{tpu_custom_call.1} parent=47 // pred_fallthru
          _
        %s350 = sand.u32 %s47, 1
        %s351 = scalar_lea.sflag [#allocation4], %s350
        %s352 = sand.u32 %s47, 1
        %s353 = smul.addr %s352, 128
        %s354 = scalar_lea.vmem [#allocation3], %s353
        %p355 = pneg %p60
        %p356 = pneg %p57
        %s357 = smul.u32 32, %s30
        %p358 = scmp.lt.s32.totalorder %s357, 95
        %s359 = scalar_select %p358, %s357, 95
        %s360 = smul.addr %s359, 4
        %s361 = scalar_lea.vmem %s1, %s360
        %p362 = pneg %p86
        %p363 = pneg %p83
        %s364 = smul.u32 32, %s29
        %p365 = scmp.lt.s32.totalorder %s364, 95
        %s366 = scalar_select %p365, %s364, 95
        %s367 = smul.addr %s366, 4
        %s368 = scalar_lea.vmem %s2, %s367
        %p369 = pneg %p112
        %p370 = pneg %p109
        %s371 = smul.u32 32, %s29
        %p372 = scmp.lt.s32.totalorder %s371, 95
        %s373 = scalar_select %p372, %s371, 95
        %s374 = smul.addr %s373, 8
        %s375 = scalar_lea.vmem %s3, %s374
        %p376 = pneg %p138
        %p377 = pneg %p135
        %p378 = pneg %p159
        %p379 = pneg %p156
        %p380 = pneg %p180
        %p381 = pneg %p177
        %p382 = pneg %p201
        %p383 = pneg %p198
        %p384 = pneg %p227
        %p385 = pneg %p224
        %s386 = sand.u32 %s214, 1
        %s387 = scalar_lea.sflag [#allocation5], %s386
        %s388 = sand.u32 %s214, 1
        %s389 = smul.addr %s388, 128
        %s390 = scalar_lea.vmem [#allocation9], %s389
        %s391 = smul.u32 8, %s29
        %s392 = smul.u32 2, %s30
        %s393 = smul.u32 32, %s30
        %p394 = scmp.lt.s32.totalorder %s393, 95
        %s395 = scalar_select %p394, %s393, 95
        %s396 = smul.addr %s395, 4
        %s397 = scalar_lea.vmem %s1, %s396
        %s398 = smul.u32 32, %s30
        %s399 = smul.u32 32, %s29
        %p400 = scmp.lt.s32.totalorder %s399, 95
        %s401 = scalar_select %p400, %s399, 95
        %s402 = smul.addr %s401, 4
        %s403 = scalar_lea.vmem %s2, %s402
        %s404 = smul.u32 32, %s29
        %s405 = smul.u32 32, %s29
        %p406 = scmp.lt.s32.totalorder %s405, 95
        %s407 = scalar_select %p406, %s405, 95
        %s408 = smul.addr %s407, 8
        %s409 = scalar_lea.vmem %s3, %s408
        %s410 = smul.u32 32, %s29
        %s411 = smul.u32 32, %s29
        %p413 = scmp.eq.s32.totalorder %s30, 0
        // Predicated region
        $region61: #{tpu_custom_call.1} parent=47 // pred_check
          %p414 = pneg %p413
        $region62: #{tpu_custom_call.1} parent=47 // pred_check_branch
          %416 = sbr.rel (%p414) target = $region64
        $region63: #{tpu_custom_call.1} parent=47 // pred_region
          %417 = vst [vmem:[#allocation2] sm:$0xff] 0.0
          %418 = vst [vmem:[#allocation2 + $0x8] sm:$0xff] 0.0
          %419 = vst [vmem:[#allocation2 + $0x10] sm:$0xff] 0.0
          %420 = vst [vmem:[#allocation2 + $0x18] sm:$0xff] 0.0
          %421 = vst [vmem:[#allocation2 + $0x20] sm:$0xff] 0.0
          %422 = vst [vmem:[#allocation2 + $0x28] sm:$0xff] 0.0
          %423 = vst [vmem:[#allocation2 + $0x30] sm:$0xff] 0.0
          %424 = vst [vmem:[#allocation2 + $0x38] sm:$0xff] 0.0
          %425 = vst [vmem:[#allocation2 + $0x40] sm:$0xff] 0.0
          %426 = vst [vmem:[#allocation2 + $0x48] sm:$0xff] 0.0
          %427 = vst [vmem:[#allocation2 + $0x50] sm:$0xff] 0.0
          %428 = vst [vmem:[#allocation2 + $0x58] sm:$0xff] 0.0
          %429 = vst [vmem:[#allocation2 + $0x60] sm:$0xff] 0.0
          %430 = vst [vmem:[#allocation2 + $0x68] sm:$0xff] 0.0
          %431 = vst [vmem:[#allocation2 + $0x70] sm:$0xff] 0.0
          %432 = vst [vmem:[#allocation2 + $0x78] sm:$0xff] 0.0
          %433 = vst [vmem:[#allocation2 + $0x80] sm:$0xff] 0.0
          %434 = vst [vmem:[#allocation2 + $0x88] sm:$0xff] 0.0
          %435 = vst [vmem:[#allocation2 + $0x90] sm:$0xff] 0.0
          %436 = vst [vmem:[#allocation2 + $0x98] sm:$0xff] 0.0
          %437 = vst [vmem:[#allocation2 + $0xa0] sm:$0xff] 0.0
          %438 = vst [vmem:[#allocation2 + $0xa8] sm:$0xff] 0.0
          %439 = vst [vmem:[#allocation2 + $0xb0] sm:$0xff] 0.0
          %440 = vst [vmem:[#allocation2 + $0xb8] sm:$0xff] 0.0
          %441 = vst [vmem:[#allocation2 + $0xc0] sm:$0xff] 0.0
          %442 = vst [vmem:[#allocation2 + $0xc8] sm:$0xff] 0.0
          %443 = vst [vmem:[#allocation2 + $0xd0] sm:$0xff] 0.0
          %444 = vst [vmem:[#allocation2 + $0xd8] sm:$0xff] 0.0
          %445 = vst [vmem:[#allocation2 + $0xe0] sm:$0xff] 0.0
          %446 = vst [vmem:[#allocation2 + $0xe8] sm:$0xff] 0.0
          %447 = vst [vmem:[#allocation2 + $0xf0] sm:$0xff] 0.0
          %448 = vst [vmem:[#allocation2 + $0xf8] sm:$0xff] 0.0
        $region64: #{tpu_custom_call.1} parent=47 // pred_fallthru
          _
        %v449 = vld [vmem:[%s337] sm:$0xff]
        %v450 = vld [vmem:[%s337 + $0x8] sm:$0xff]
        %v451 = vld [vmem:[%s337 + $0x10] sm:$0xff]
        %v452 = vld [vmem:[%s337 + $0x18] sm:$0xff]
        %v453 = vld [vmem:[%s337 + $0x20] sm:$0xff]
        %v454 = vld [vmem:[%s337 + $0x28] sm:$0xff]
        %v455 = vld [vmem:[%s337 + $0x30] sm:$0xff]
        %v456 = vld [vmem:[%s337 + $0x38] sm:$0xff]
        %v457 = vld [vmem:[%s337 + $0x40] sm:$0xff]
        %v458 = vld [vmem:[%s337 + $0x48] sm:$0xff]
        %v459 = vld [vmem:[%s337 + $0x50] sm:$0xff]
        %v460 = vld [vmem:[%s337 + $0x58] sm:$0xff]
        %v461 = vld [vmem:[%s337 + $0x60] sm:$0xff]
        %v462 = vld [vmem:[%s337 + $0x68] sm:$0xff]
        %v463 = vld [vmem:[%s337 + $0x70] sm:$0xff]
        %v464 = vld [vmem:[%s337 + $0x78] sm:$0xff]
        %v465 = vunpack.c.l.s8.bf16 %v449
        %v466 = vunpack.c.l.s8.bf16 %v450
        %v467 = vunpack.c.h.s8.bf16 %v449
        %v468 = vunpack.c.h.s8.bf16 %v450
        %v469 = vunpack.c.l.s8.bf16 %v451
        %v470 = vunpack.c.l.s8.bf16 %v452
        %v471 = vunpack.c.h.s8.bf16 %v451
        %v472 = vunpack.c.h.s8.bf16 %v452
        %v473 = vunpack.c.l.s8.bf16 %v453
        %v474 = vunpack.c.l.s8.bf16 %v454
        %v475 = vunpack.c.h.s8.bf16 %v453
        %v476 = vunpack.c.h.s8.bf16 %v454
        %v477 = vunpack.c.l.s8.bf16 %v455
        %v478 = vunpack.c.l.s8.bf16 %v456
        %v479 = vunpack.c.h.s8.bf16 %v455
        %v480 = vunpack.c.h.s8.bf16 %v456
        %v481 = vunpack.c.l.s8.bf16 %v457
        %v482 = vunpack.c.l.s8.bf16 %v458
        %v483 = vunpack.c.h.s8.bf16 %v457
        %v484 = vunpack.c.h.s8.bf16 %v458
        %v485 = vunpack.c.l.s8.bf16 %v459
        %v486 = vunpack.c.l.s8.bf16 %v460
        %v487 = vunpack.c.h.s8.bf16 %v459
        %v488 = vunpack.c.h.s8.bf16 %v460
        %v489 = vunpack.c.l.s8.bf16 %v461
        %v490 = vunpack.c.l.s8.bf16 %v462
        %v491 = vunpack.c.h.s8.bf16 %v461
        %v492 = vunpack.c.h.s8.bf16 %v462
        %v493 = vunpack.c.l.s8.bf16 %v463
        %v494 = vunpack.c.l.s8.bf16 %v464
        %v495 = vunpack.c.h.s8.bf16 %v463
        %v496 = vunpack.c.h.s8.bf16 %v464
        %v497 = vld [vmem:[#allocation2] sm:$0xff]
        %v498 = vld [vmem:[#allocation2 + $0x8] sm:$0xff]
        %v499 = vld [vmem:[#allocation2 + $0x10] sm:$0xff]
        %v500 = vld [vmem:[#allocation2 + $0x18] sm:$0xff]
        %v501 = vld [vmem:[#allocation2 + $0x20] sm:$0xff]
        %v502 = vld [vmem:[#allocation2 + $0x28] sm:$0xff]
        %v503 = vld [vmem:[#allocation2 + $0x30] sm:$0xff]
        %v504 = vld [vmem:[#allocation2 + $0x38] sm:$0xff]
        %v505 = vld [vmem:[#allocation2 + $0x40] sm:$0xff]
        %v506 = vld [vmem:[#allocation2 + $0x48] sm:$0xff]
        %v507 = vld [vmem:[#allocation2 + $0x50] sm:$0xff]
        %v508 = vld [vmem:[#allocation2 + $0x58] sm:$0xff]
        %v509 = vld [vmem:[#allocation2 + $0x60] sm:$0xff]
        %v510 = vld [vmem:[#allocation2 + $0x68] sm:$0xff]
        %v511 = vld [vmem:[#allocation2 + $0x70] sm:$0xff]
        %v512 = vld [vmem:[#allocation2 + $0x78] sm:$0xff]
        %v513 = vld [vmem:[#allocation2 + $0x80] sm:$0xff]
        %v514 = vld [vmem:[#allocation2 + $0x88] sm:$0xff]
        %v515 = vld [vmem:[#allocation2 + $0x90] sm:$0xff]
        %v516 = vld [vmem:[#allocation2 + $0x98] sm:$0xff]
        %v517 = vld [vmem:[#allocation2 + $0xa0] sm:$0xff]
        %v518 = vld [vmem:[#allocation2 + $0xa8] sm:$0xff]
        %v519 = vld [vmem:[#allocation2 + $0xb0] sm:$0xff]
        %v520 = vld [vmem:[#allocation2 + $0xb8] sm:$0xff]
        %v521 = vld [vmem:[#allocation2 + $0xc0] sm:$0xff]
        %v522 = vld [vmem:[#allocation2 + $0xc8] sm:$0xff]
        %v523 = vld [vmem:[#allocation2 + $0xd0] sm:$0xff]
        %v524 = vld [vmem:[#allocation2 + $0xd8] sm:$0xff]
        %v525 = vld [vmem:[#allocation2 + $0xe0] sm:$0xff]
        %v526 = vld [vmem:[#allocation2 + $0xe8] sm:$0xff]
        %v527 = vld [vmem:[#allocation2 + $0xf0] sm:$0xff]
        %v528 = vld [vmem:[#allocation2 + $0xf8] sm:$0xff]
        %v529 = vld [vmem:[%s397] sm:$0xf]
        %v530 = vld [vmem:[%s397 + $0x4] sm:$0xf]
        %v531 = vld [vmem:[%s397 + $0x8] sm:$0xf]
        %v532 = vld [vmem:[%s397 + $0xc] sm:$0xf]
        %v533 = vld [vmem:[%s397 + $0x10] sm:$0xf]
        %v534 = vld [vmem:[%s397 + $0x14] sm:$0xf]
        %v535 = vld [vmem:[%s397 + $0x18] sm:$0xf]
        %v536 = vld [vmem:[%s397 + $0x1c] sm:$0xf]
        %v537 = vld [vmem:[%s397 + $0x20] sm:$0xf]
        %v538 = vld [vmem:[%s397 + $0x24] sm:$0xf]
        %v539 = vld [vmem:[%s397 + $0x28] sm:$0xf]
        %v540 = vld [vmem:[%s397 + $0x2c] sm:$0xf]
        %v541 = vld [vmem:[%s397 + $0x30] sm:$0xf]
        %v542 = vld [vmem:[%s397 + $0x34] sm:$0xf]
        %v543 = vld [vmem:[%s397 + $0x38] sm:$0xf]
        %v544 = vld [vmem:[%s397 + $0x3c] sm:$0xf]
        %v545 = vld [vmem:[%s397 + $0x40] sm:$0xf]
        %v546 = vld [vmem:[%s397 + $0x44] sm:$0xf]
        %v547 = vld [vmem:[%s397 + $0x48] sm:$0xf]
        %v548 = vld [vmem:[%s397 + $0x4c] sm:$0xf]
        %v549 = vld [vmem:[%s397 + $0x50] sm:$0xf]
        %v550 = vld [vmem:[%s397 + $0x54] sm:$0xf]
        %v551 = vld [vmem:[%s397 + $0x58] sm:$0xf]
        %v552 = vld [vmem:[%s397 + $0x5c] sm:$0xf]
        %v553 = vld [vmem:[%s397 + $0x60] sm:$0xf]
        %v554 = vld [vmem:[%s397 + $0x64] sm:$0xf]
        %v555 = vld [vmem:[%s397 + $0x68] sm:$0xf]
        %v556 = vld [vmem:[%s397 + $0x6c] sm:$0xf]
        %v557 = vld [vmem:[%s397 + $0x70] sm:$0xf]
        %v558 = vld [vmem:[%s397 + $0x74] sm:$0xf]
        %v559 = vld [vmem:[%s397 + $0x78] sm:$0xf]
        %v560 = vld [vmem:[%s397 + $0x7c] sm:$0xf]
        %v593 = vunpack.c.l.b16 %v529
        %v594 = vunpack.c.l.b16 %v530
        %v595 = vunpack.c.l.b16 %v531
        %v596 = vunpack.c.l.b16 %v532
        %v597 = vunpack.c.l.b16 %v533
        %v598 = vunpack.c.l.b16 %v534
        %v599 = vunpack.c.l.b16 %v535
        %v600 = vunpack.c.l.b16 %v536
        %v601 = vunpack.c.l.b16 %v537
        %v602 = vunpack.c.l.b16 %v538
        %v603 = vunpack.c.l.b16 %v539
        %v604 = vunpack.c.l.b16 %v540
        %v605 = vunpack.c.l.b16 %v541
        %v606 = vunpack.c.l.b16 %v542
        %v607 = vunpack.c.l.b16 %v543
        %v608 = vunpack.c.l.b16 %v544
        %v609 = vunpack.c.l.b16 %v545
        %v610 = vunpack.c.l.b16 %v546
        %v611 = vunpack.c.l.b16 %v547
        %v612 = vunpack.c.l.b16 %v548
        %v613 = vunpack.c.l.b16 %v549
        %v614 = vunpack.c.l.b16 %v550
        %v615 = vunpack.c.l.b16 %v551
        %v616 = vunpack.c.l.b16 %v552
        %v617 = vunpack.c.l.b16 %v553
        %v618 = vunpack.c.l.b16 %v554
        %v619 = vunpack.c.l.b16 %v555
        %v620 = vunpack.c.l.b16 %v556
        %v621 = vunpack.c.l.b16 %v557
        %v622 = vunpack.c.l.b16 %v558
        %v623 = vunpack.c.l.b16 %v559
        %v624 = vunpack.c.l.b16 %v560
        %v625 = vpack.c.b16 %v594, %v593
        %v626 = vpack.c.b16 %v596, %v595
        %v627 = vpack.c.b16 %v598, %v597
        %v628 = vpack.c.b16 %v600, %v599
        %v629 = vpack.c.b16 %v602, %v601
        %v630 = vpack.c.b16 %v604, %v603
        %v631 = vpack.c.b16 %v606, %v605
        %v632 = vpack.c.b16 %v608, %v607
        %v633 = vpack.c.b16 %v610, %v609
        %v634 = vpack.c.b16 %v612, %v611
        %v635 = vpack.c.b16 %v614, %v613
        %v636 = vpack.c.b16 %v616, %v615
        %v637 = vpack.c.b16 %v618, %v617
        %v638 = vpack.c.b16 %v620, %v619
        %v639 = vpack.c.b16 %v622, %v621
        %v640 = vpack.c.b16 %v624, %v623
        %657 = vmatprep.subr.bf16.mxu0 0
        %658 = vmatpush1.bf16.msra.mxu0 %v625
        %659 = vmatprep.subr.bf16.mxu0 0
        %660 = vmatpush1.bf16.msra.mxu0 %v626
        %661 = vmatprep.subr.bf16.mxu0 0
        %662 = vmatpush1.bf16.msra.mxu0 %v627
        %663 = vmatprep.subr.bf16.mxu0 0
        %664 = vmatpush1.bf16.msra.mxu0 %v628
        %665 = vmatprep.subr.bf16.mxu0 0
        %666 = vmatpush1.bf16.msra.mxu0 %v629
        %667 = vmatprep.subr.bf16.mxu0 0
        %668 = vmatpush1.bf16.msra.mxu0 %v630
        %669 = vmatprep.subr.bf16.mxu0 0
        %670 = vmatpush1.bf16.msra.mxu0 %v631
        %671 = vmatprep.subr.bf16.mxu0 0
        %672 = vmatpush1.bf16.msra.mxu0 %v632
        %673 = vmatprep.subr.bf16.mxu0 0
        %674 = vmatpush1.bf16.msra.mxu0 %v633
        %675 = vmatprep.subr.bf16.mxu0 0
        %676 = vmatpush1.bf16.msra.mxu0 %v634
        %677 = vmatprep.subr.bf16.mxu0 0
        %678 = vmatpush1.bf16.msra.mxu0 %v635
        %679 = vmatprep.subr.bf16.mxu0 0
        %680 = vmatpush1.bf16.msra.mxu0 %v636
        %681 = vmatprep.subr.bf16.mxu0 0
        %682 = vmatpush1.bf16.msra.mxu0 %v637
        %683 = vmatprep.subr.bf16.mxu0 0
        %684 = vmatpush1.bf16.msra.mxu0 %v638
        %685 = vmatprep.subr.bf16.mxu0 0
        %686 = vmatpush1.bf16.msra.mxu0 %v639
        %687 = vmatprep.subr.bf16.mxu0 0
        %688 = vmatpush1.bf16.msra.mxu0 %v640
        %689 = vmatprep.mubr.bf16.mxu0 %v466
        %690 = vmatmul.mubr.bf16.gmra.mrb[0].mxu0 %v465
        %v691 = vpop.f32.mrb[0].mxu0
        %v692 = vadd.f32 0.0, %v691
        %v693 = vpop.f32.mrb[0].mxu0
        %v694 = vpop.f32.mrb[0].mxu0
        %v695 = vadd.f32 0.0, %v694
        %v696 = vpop.f32.mrb[0].mxu0
        %697 = vmatprep.mubr.bf16.mxu0 %v468
        %698 = vmatmul.mubr.bf16.gmra.mrb[0].mxu0 %v467
        %v699 = vpop.f32.mrb[0].mxu0
        %v700 = vadd.f32 0.0, %v699
        %v701 = vpop.f32.mrb[0].mxu0
        %v702 = vpop.f32.mrb[0].mxu0
        %v703 = vadd.f32 0.0, %v702
        %v704 = vpop.f32.mrb[0].mxu0
        %705 = vmatprep.mubr.bf16.mxu0 %v470
        %706 = vmatmul.mubr.bf16.gmra.mrb[0].mxu0 %v469
        %v707 = vpop.f32.mrb[0].mxu0
        %v708 = vadd.f32 0.0, %v707
        %v709 = vpop.f32.mrb[0].mxu0
        %v710 = vpop.f32.mrb[0].mxu0
        %v711 = vadd.f32 0.0, %v710
        %v712 = vpop.f32.mrb[0].mxu0
        %713 = vmatprep.mubr.bf16.mxu0 %v472
        %714 = vmatmul.mubr.bf16.gmra.mrb[0].mxu0 %v471
        %v715 = vpop.f32.mrb[0].mxu0
        %v716 = vadd.f32 0.0, %v715
        %v717 = vpop.f32.mrb[0].mxu0
        %v718 = vpop.f32.mrb[0].mxu0
        %v719 = vadd.f32 0.0, %v718
        %v720 = vpop.f32.mrb[0].mxu0
        %721 = vmatprep.mubr.bf16.mxu0 %v474
        %722 = vmatmul.mubr.bf16.gmra.mrb[0].mxu0 %v473
        %v723 = vpop.f32.mrb[0].mxu0
        %v724 = vadd.f32 0.0, %v723
        %v725 = vpop.f32.mrb[0].mxu0
        %v726 = vpop.f32.mrb[0].mxu0
        %v727 = vadd.f32 0.0, %v726
        %v728 = vpop.f32.mrb[0].mxu0
        %729 = vmatprep.mubr.bf16.mxu0 %v476
        %730 = vmatmul.mubr.bf16.gmra.mrb[0].mxu0 %v475
        %v731 = vpop.f32.mrb[0].mxu0
        %v732 = vadd.f32 0.0, %v731
        %v733 = vpop.f32.mrb[0].mxu0
        %v734 = vpop.f32.mrb[0].mxu0
        %v735 = vadd.f32 0.0, %v734
        %v736 = vpop.f32.mrb[0].mxu0
        %737 = vmatprep.mubr.bf16.mxu0 %v478
        %738 = vmatmul.mubr.bf16.gmra.mrb[0].mxu0 %v477
        %v739 = vpop.f32.mrb[0].mxu0
        %v740 = vadd.f32 0.0, %v739
        %v741 = vpop.f32.mrb[0].mxu0
        %v742 = vpop.f32.mrb[0].mxu0
        %v743 = vadd.f32 0.0, %v742
        %v744 = vpop.f32.mrb[0].mxu0
        %745 = vmatprep.mubr.bf16.mxu0 %v480
        %746 = vmatmul.mubr.bf16.gmra.mrb[0].mxu0 %v479
        %v747 = vpop.f32.mrb[0].mxu0
        %v748 = vadd.f32 0.0, %v747
        %v749 = vpop.f32.mrb[0].mxu0
        %v750 = vpop.f32.mrb[0].mxu0
        %v751 = vadd.f32 0.0, %v750
        %v752 = vpop.f32.mrb[0].mxu0
        %753 = vmatprep.mubr.bf16.mxu0 %v482
        %754 = vmatmul.mubr.bf16.gmra.mrb[0].mxu0 %v481
        %v755 = vpop.f32.mrb[0].mxu0
        %v756 = vadd.f32 0.0, %v755
        %v757 = vpop.f32.mrb[0].mxu0
        %v758 = vpop.f32.mrb[0].mxu0
        %v759 = vadd.f32 0.0, %v758
        %v760 = vpop.f32.mrb[0].mxu0
        %761 = vmatprep.mubr.bf16.mxu0 %v484
        %762 = vmatmul.mubr.bf16.gmra.mrb[0].mxu0 %v483
        %v763 = vpop.f32.mrb[0].mxu0
        %v764 = vadd.f32 0.0, %v763
        %v765 = vpop.f32.mrb[0].mxu0
        %v766 = vpop.f32.mrb[0].mxu0
        %v767 = vadd.f32 0.0, %v766
        %v768 = vpop.f32.mrb[0].mxu0
        %769 = vmatprep.mubr.bf16.mxu0 %v486
        %770 = vmatmul.mubr.bf16.gmra.mrb[0].mxu0 %v485
        %v771 = vpop.f32.mrb[0].mxu0
        %v772 = vadd.f32 0.0, %v771
        %v773 = vpop.f32.mrb[0].mxu0
        %v774 = vpop.f32.mrb[0].mxu0
        %v775 = vadd.f32 0.0, %v774
        %v776 = vpop.f32.mrb[0].mxu0
        %777 = vmatprep.mubr.bf16.mxu0 %v488
        %778 = vmatmul.mubr.bf16.gmra.mrb[0].mxu0 %v487
        %v779 = vpop.f32.mrb[0].mxu0
        %v780 = vadd.f32 0.0, %v779
        %v781 = vpop.f32.mrb[0].mxu0
        %v782 = vpop.f32.mrb[0].mxu0
        %v783 = vadd.f32 0.0, %v782
        %v784 = vpop.f32.mrb[0].mxu0
        %785 = vmatprep.mubr.bf16.mxu0 %v490
        %786 = vmatmul.mubr.bf16.gmra.mrb[0].mxu0 %v489
        %v787 = vpop.f32.mrb[0].mxu0
        %v788 = vadd.f32 0.0, %v787
        %v789 = vpop.f32.mrb[0].mxu0
        %v790 = vpop.f32.mrb[0].mxu0
        %v791 = vadd.f32 0.0, %v790
        %v792 = vpop.f32.mrb[0].mxu0
        %793 = vmatprep.mubr.bf16.mxu0 %v492
        %794 = vmatmul.mubr.bf16.gmra.mrb[0].mxu0 %v491
        %v795 = vpop.f32.mrb[0].mxu0
        %v796 = vadd.f32 0.0, %v795
        %v797 = vpop.f32.mrb[0].mxu0
        %v798 = vpop.f32.mrb[0].mxu0
        %v799 = vadd.f32 0.0, %v798
        %v800 = vpop.f32.mrb[0].mxu0
        %801 = vmatprep.mubr.bf16.mxu0 %v494
        %802 = vmatmul.mubr.bf16.gmra.mrb[0].mxu0 %v493
        %v803 = vpop.f32.mrb[0].mxu0
        %v804 = vadd.f32 0.0, %v803
        %v805 = vpop.f32.mrb[0].mxu0
        %v806 = vpop.f32.mrb[0].mxu0
        %v807 = vadd.f32 0.0, %v806
        %v808 = vpop.f32.mrb[0].mxu0
        %809 = vmatprep.mubr.bf16.mxu0 %v496
        %810 = vmatmul.mubr.bf16.gmra.mrb[0].mxu0 %v495
        %v811 = vpop.f32.mrb[0].mxu0
        %v812 = vadd.f32 0.0, %v811
        %v813 = vpop.f32.mrb[0].mxu0
        %v814 = vpop.f32.mrb[0].mxu0
        %v815 = vadd.f32 0.0, %v814
        %v816 = vpop.f32.mrb[0].mxu0
        %817 = vdwg.mxu0
        %v818 = vadd.f32 %v497, %v692
        %v819 = vadd.f32 %v498, %v695
        %v820 = vadd.f32 %v499, %v700
        %v821 = vadd.f32 %v500, %v703
        %v822 = vadd.f32 %v501, %v708
        %v823 = vadd.f32 %v502, %v711
        %v824 = vadd.f32 %v503, %v716
        %v825 = vadd.f32 %v504, %v719
        %v826 = vadd.f32 %v505, %v724
        %v827 = vadd.f32 %v506, %v727
        %v828 = vadd.f32 %v507, %v732
        %v829 = vadd.f32 %v508, %v735
        %v830 = vadd.f32 %v509, %v740
        %v831 = vadd.f32 %v510, %v743
        %v832 = vadd.f32 %v511, %v748
        %v833 = vadd.f32 %v512, %v751
        %v834 = vadd.f32 %v513, %v756
        %v835 = vadd.f32 %v514, %v759
        %v836 = vadd.f32 %v515, %v764
        %v837 = vadd.f32 %v516, %v767
        %v838 = vadd.f32 %v517, %v772
        %v839 = vadd.f32 %v518, %v775
        %v840 = vadd.f32 %v519, %v780
        %v841 = vadd.f32 %v520, %v783
        %v842 = vadd.f32 %v521, %v788
        %v843 = vadd.f32 %v522, %v791
        %v844 = vadd.f32 %v523, %v796
        %v845 = vadd.f32 %v524, %v799
        %v846 = vadd.f32 %v525, %v804
        %v847 = vadd.f32 %v526, %v807
        %v848 = vadd.f32 %v527, %v812
        %v849 = vadd.f32 %v528, %v815
        %850 = vst [vmem:[#allocation2] sm:$0xff] %v818
        %851 = vst [vmem:[#allocation2 + $0x8] sm:$0xff] %v819
        %852 = vst [vmem:[#allocation2 + $0x10] sm:$0xff] %v820
        %853 = vst [vmem:[#allocation2 + $0x18] sm:$0xff] %v821
        %854 = vst [vmem:[#allocation2 + $0x20] sm:$0xff] %v822
        %855 = vst [vmem:[#allocation2 + $0x28] sm:$0xff] %v823
        %856 = vst [vmem:[#allocation2 + $0x30] sm:$0xff] %v824
        %857 = vst [vmem:[#allocation2 + $0x38] sm:$0xff] %v825
        %858 = vst [vmem:[#allocation2 + $0x40] sm:$0xff] %v826
        %859 = vst [vmem:[#allocation2 + $0x48] sm:$0xff] %v827
        %860 = vst [vmem:[#allocation2 + $0x50] sm:$0xff] %v828
        %861 = vst [vmem:[#allocation2 + $0x58] sm:$0xff] %v829
        %862 = vst [vmem:[#allocation2 + $0x60] sm:$0xff] %v830
        %863 = vst [vmem:[#allocation2 + $0x68] sm:$0xff] %v831
        %864 = vst [vmem:[#allocation2 + $0x70] sm:$0xff] %v832
        %865 = vst [vmem:[#allocation2 + $0x78] sm:$0xff] %v833
        %866 = vst [vmem:[#allocation2 + $0x80] sm:$0xff] %v834
        %867 = vst [vmem:[#allocation2 + $0x88] sm:$0xff] %v835
        %868 = vst [vmem:[#allocation2 + $0x90] sm:$0xff] %v836
        %869 = vst [vmem:[#allocation2 + $0x98] sm:$0xff] %v837
        %870 = vst [vmem:[#allocation2 + $0xa0] sm:$0xff] %v838
        %871 = vst [vmem:[#allocation2 + $0xa8] sm:$0xff] %v839
        %872 = vst [vmem:[#allocation2 + $0xb0] sm:$0xff] %v840
        %873 = vst [vmem:[#allocation2 + $0xb8] sm:$0xff] %v841
        %874 = vst [vmem:[#allocation2 + $0xc0] sm:$0xff] %v842
        %875 = vst [vmem:[#allocation2 + $0xc8] sm:$0xff] %v843
        %876 = vst [vmem:[#allocation2 + $0xd0] sm:$0xff] %v844
        %877 = vst [vmem:[#allocation2 + $0xd8] sm:$0xff] %v845
        %878 = vst [vmem:[#allocation2 + $0xe0] sm:$0xff] %v846
        %879 = vst [vmem:[#allocation2 + $0xe8] sm:$0xff] %v847
        %880 = vst [vmem:[#allocation2 + $0xf0] sm:$0xff] %v848
        %881 = vst [vmem:[#allocation2 + $0xf8] sm:$0xff] %v849
        %p882 = scmp.eq.s32.totalorder %s30, 2
        // Predicated region
        $region65: #{tpu_custom_call.1} parent=47 // pred_check
          %p883 = pneg %p882
        $region66: #{tpu_custom_call.1} parent=47 // pred_check_branch
          %885 = sbr.rel (%p883) target = $region68
        $region67: #{tpu_custom_call.1} parent=47 // pred_region
          %v886 = vld [vmem:[#allocation2] sm:$0xff]
          %v887 = vld [vmem:[#allocation2 + $0x8] sm:$0xff]
          %v888 = vld [vmem:[#allocation2 + $0x10] sm:$0xff]
          %v889 = vld [vmem:[#allocation2 + $0x18] sm:$0xff]
          %v890 = vld [vmem:[#allocation2 + $0x20] sm:$0xff]
          %v891 = vld [vmem:[#allocation2 + $0x28] sm:$0xff]
          %v892 = vld [vmem:[#allocation2 + $0x30] sm:$0xff]
          %v893 = vld [vmem:[#allocation2 + $0x38] sm:$0xff]
          %v894 = vld [vmem:[#allocation2 + $0x40] sm:$0xff]
          %v895 = vld [vmem:[#allocation2 + $0x48] sm:$0xff]
          %v896 = vld [vmem:[#allocation2 + $0x50] sm:$0xff]
          %v897 = vld [vmem:[#allocation2 + $0x58] sm:$0xff]
          %v898 = vld [vmem:[#allocation2 + $0x60] sm:$0xff]
          %v899 = vld [vmem:[#allocation2 + $0x68] sm:$0xff]
          %v900 = vld [vmem:[#allocation2 + $0x70] sm:$0xff]
          %v901 = vld [vmem:[#allocation2 + $0x78] sm:$0xff]
          %v902 = vld [vmem:[#allocation2 + $0x80] sm:$0xff]
          %v903 = vld [vmem:[#allocation2 + $0x88] sm:$0xff]
          %v904 = vld [vmem:[#allocation2 + $0x90] sm:$0xff]
          %v905 = vld [vmem:[#allocation2 + $0x98] sm:$0xff]
          %v906 = vld [vmem:[#allocation2 + $0xa0] sm:$0xff]
          %v907 = vld [vmem:[#allocation2 + $0xa8] sm:$0xff]
          %v908 = vld [vmem:[#allocation2 + $0xb0] sm:$0xff]
          %v909 = vld [vmem:[#allocation2 + $0xb8] sm:$0xff]
          %v910 = vld [vmem:[#allocation2 + $0xc0] sm:$0xff]
          %v911 = vld [vmem:[#allocation2 + $0xc8] sm:$0xff]
          %v912 = vld [vmem:[#allocation2 + $0xd0] sm:$0xff]
          %v913 = vld [vmem:[#allocation2 + $0xd8] sm:$0xff]
          %v914 = vld [vmem:[#allocation2 + $0xe0] sm:$0xff]
          %v915 = vld [vmem:[#allocation2 + $0xe8] sm:$0xff]
          %v916 = vld [vmem:[#allocation2 + $0xf0] sm:$0xff]
          %v917 = vld [vmem:[#allocation2 + $0xf8] sm:$0xff]
          %v918 = vld [vmem:[%s409] sm:$0xff]
          %v919 = vld [vmem:[%s409 + $0x8] sm:$0xff]
          %v920 = vld [vmem:[%s409 + $0x10] sm:$0xff]
          %v921 = vld [vmem:[%s409 + $0x18] sm:$0xff]
          %v922 = vld [vmem:[%s409 + $0x20] sm:$0xff]
          %v923 = vld [vmem:[%s409 + $0x28] sm:$0xff]
          %v924 = vld [vmem:[%s409 + $0x30] sm:$0xff]
          %v925 = vld [vmem:[%s409 + $0x38] sm:$0xff]
          %v926 = vld [vmem:[%s409 + $0x40] sm:$0xff]
          %v927 = vld [vmem:[%s409 + $0x48] sm:$0xff]
          %v928 = vld [vmem:[%s409 + $0x50] sm:$0xff]
          %v929 = vld [vmem:[%s409 + $0x58] sm:$0xff]
          %v930 = vld [vmem:[%s409 + $0x60] sm:$0xff]
          %v931 = vld [vmem:[%s409 + $0x68] sm:$0xff]
          %v932 = vld [vmem:[%s409 + $0x70] sm:$0xff]
          %v933 = vld [vmem:[%s409 + $0x78] sm:$0xff]
          %v934 = vld [vmem:[%s409 + $0x80] sm:$0xff]
          %v935 = vld [vmem:[%s409 + $0x88] sm:$0xff]
          %v936 = vld [vmem:[%s409 + $0x90] sm:$0xff]
          %v937 = vld [vmem:[%s409 + $0x98] sm:$0xff]
          %v938 = vld [vmem:[%s409 + $0xa0] sm:$0xff]
          %v939 = vld [vmem:[%s409 + $0xa8] sm:$0xff]
          %v940 = vld [vmem:[%s409 + $0xb0] sm:$0xff]
          %v941 = vld [vmem:[%s409 + $0xb8] sm:$0xff]
          %v942 = vld [vmem:[%s409 + $0xc0] sm:$0xff]
          %v943 = vld [vmem:[%s409 + $0xc8] sm:$0xff]
          %v944 = vld [vmem:[%s409 + $0xd0] sm:$0xff]
          %v945 = vld [vmem:[%s409 + $0xd8] sm:$0xff]
          %v946 = vld [vmem:[%s409 + $0xe0] sm:$0xff]
          %v947 = vld [vmem:[%s409 + $0xe8] sm:$0xff]
          %v948 = vld [vmem:[%s409 + $0xf0] sm:$0xff]
          %v949 = vld [vmem:[%s409 + $0xf8] sm:$0xff]
          %951 = vset.pattern.permute.xlu0 0
          %952 = vperm.xlu0 %951, %v918
          %v953 = vpop.permute.xlu0 %952
          %956 = vset.pattern.permute.xlu0 0
          %957 = vperm.xlu0 %956, %v919
          %v958 = vpop.permute.xlu0 %957
          %961 = vset.pattern.permute.xlu0 0
          %962 = vperm.xlu0 %961, %v920
          %v963 = vpop.permute.xlu0 %962
          %966 = vset.pattern.permute.xlu0 0
          %967 = vperm.xlu0 %966, %v921
          %v968 = vpop.permute.xlu0 %967
          %971 = vset.pattern.permute.xlu0 0
          %972 = vperm.xlu0 %971, %v922
          %v973 = vpop.permute.xlu0 %972
          %976 = vset.pattern.permute.xlu0 0
          %977 = vperm.xlu0 %976, %v923
          %v978 = vpop.permute.xlu0 %977
          %981 = vset.pattern.permute.xlu0 0
          %982 = vperm.xlu0 %981, %v924
          %v983 = vpop.permute.xlu0 %982
          %986 = vset.pattern.permute.xlu0 0
          %987 = vperm.xlu0 %986, %v925
          %v988 = vpop.permute.xlu0 %987
          %991 = vset.pattern.permute.xlu0 0
          %992 = vperm.xlu0 %991, %v926
          %v993 = vpop.permute.xlu0 %992
          %996 = vset.pattern.permute.xlu0 0
          %997 = vperm.xlu0 %996, %v927
          %v998 = vpop.permute.xlu0 %997
          %1001 = vset.pattern.permute.xlu0 0
          %1002 = vperm.xlu0 %1001, %v928
          %v1003 = vpop.permute.xlu0 %1002
          %1006 = vset.pattern.permute.xlu0 0
          %1007 = vperm.xlu0 %1006, %v929
          %v1008 = vpop.permute.xlu0 %1007
          %1011 = vset.pattern.permute.xlu0 0
          %1012 = vperm.xlu0 %1011, %v930
          %v1013 = vpop.permute.xlu0 %1012
          %1016 = vset.pattern.permute.xlu0 0
          %1017 = vperm.xlu0 %1016, %v931
          %v1018 = vpop.permute.xlu0 %1017
          %1021 = vset.pattern.permute.xlu0 0
          %1022 = vperm.xlu0 %1021, %v932
          %v1023 = vpop.permute.xlu0 %1022
          %1026 = vset.pattern.permute.xlu0 0
          %1027 = vperm.xlu0 %1026, %v933
          %v1028 = vpop.permute.xlu0 %1027
          %1031 = vset.pattern.permute.xlu0 0
          %1032 = vperm.xlu0 %1031, %v934
          %v1033 = vpop.permute.xlu0 %1032
          %1036 = vset.pattern.permute.xlu0 0
          %1037 = vperm.xlu0 %1036, %v935
          %v1038 = vpop.permute.xlu0 %1037
          %1041 = vset.pattern.permute.xlu0 0
          %1042 = vperm.xlu0 %1041, %v936
          %v1043 = vpop.permute.xlu0 %1042
          %1046 = vset.pattern.permute.xlu0 0
          %1047 = vperm.xlu0 %1046, %v937
          %v1048 = vpop.permute.xlu0 %1047
          %1051 = vset.pattern.permute.xlu0 0
          %1052 = vperm.xlu0 %1051, %v938
          %v1053 = vpop.permute.xlu0 %1052
          %1056 = vset.pattern.permute.xlu0 0
          %1057 = vperm.xlu0 %1056, %v939
          %v1058 = vpop.permute.xlu0 %1057
          %1061 = vset.pattern.permute.xlu0 0
          %1062 = vperm.xlu0 %1061, %v940
          %v1063 = vpop.permute.xlu0 %1062
          %1066 = vset.pattern.permute.xlu0 0
          %1067 = vperm.xlu0 %1066, %v941
          %v1068 = vpop.permute.xlu0 %1067
          %1071 = vset.pattern.permute.xlu0 0
          %1072 = vperm.xlu0 %1071, %v942
          %v1073 = vpop.permute.xlu0 %1072
          %1076 = vset.pattern.permute.xlu0 0
          %1077 = vperm.xlu0 %1076, %v943
          %v1078 = vpop.permute.xlu0 %1077
          %1081 = vset.pattern.permute.xlu0 0
          %1082 = vperm.xlu0 %1081, %v944
          %v1083 = vpop.permute.xlu0 %1082
          %1086 = vset.pattern.permute.xlu0 0
          %1087 = vperm.xlu0 %1086, %v945
          %v1088 = vpop.permute.xlu0 %1087
          %1091 = vset.pattern.permute.xlu0 0
          %1092 = vperm.xlu0 %1091, %v946
          %v1093 = vpop.permute.xlu0 %1092
          %1096 = vset.pattern.permute.xlu0 0
          %1097 = vperm.xlu0 %1096, %v947
          %v1098 = vpop.permute.xlu0 %1097
          %1101 = vset.pattern.permute.xlu0 0
          %1102 = vperm.xlu0 %1101, %v948
          %v1103 = vpop.permute.xlu0 %1102
          %1106 = vset.pattern.permute.xlu0 0
          %1107 = vperm.xlu0 %1106, %v949
          %v1108 = vpop.permute.xlu0 %1107
          %v1110 = vmul.f32 %v886, %v953
          %v1111 = vmul.f32 %v887, %v958
          %v1112 = vmul.f32 %v888, %v963
          %v1113 = vmul.f32 %v889, %v968
          %v1114 = vmul.f32 %v890, %v973
          %v1115 = vmul.f32 %v891, %v978
          %v1116 = vmul.f32 %v892, %v983
          %v1117 = vmul.f32 %v893, %v988
          %v1118 = vmul.f32 %v894, %v993
          %v1119 = vmul.f32 %v895, %v998
          %v1120 = vmul.f32 %v896, %v1003
          %v1121 = vmul.f32 %v897, %v1008
          %v1122 = vmul.f32 %v898, %v1013
          %v1123 = vmul.f32 %v899, %v1018
          %v1124 = vmul.f32 %v900, %v1023
          %v1125 = vmul.f32 %v901, %v1028
          %v1126 = vmul.f32 %v902, %v1033
          %v1127 = vmul.f32 %v903, %v1038
          %v1128 = vmul.f32 %v904, %v1043
          %v1129 = vmul.f32 %v905, %v1048
          %v1130 = vmul.f32 %v906, %v1053
          %v1131 = vmul.f32 %v907, %v1058
          %v1132 = vmul.f32 %v908, %v1063
          %v1133 = vmul.f32 %v909, %v1068
          %v1134 = vmul.f32 %v910, %v1073
          %v1135 = vmul.f32 %v911, %v1078
          %v1136 = vmul.f32 %v912, %v1083
          %v1137 = vmul.f32 %v913, %v1088
          %v1138 = vmul.f32 %v914, %v1093
          %v1139 = vmul.f32 %v915, %v1098
          %v1140 = vmul.f32 %v916, %v1103
          %v1141 = vmul.f32 %v917, %v1108
          %v1142 = vpack.c.bf16 %v1111, %v1110
          %v1143 = vpack.c.bf16 %v1113, %v1112
          %v1144 = vpack.c.bf16 %v1115, %v1114
          %v1145 = vpack.c.bf16 %v1117, %v1116
          %v1146 = vpack.c.bf16 %v1119, %v1118
          %v1147 = vpack.c.bf16 %v1121, %v1120
          %v1148 = vpack.c.bf16 %v1123, %v1122
          %v1149 = vpack.c.bf16 %v1125, %v1124
          %v1150 = vpack.c.bf16 %v1127, %v1126
          %v1151 = vpack.c.bf16 %v1129, %v1128
          %v1152 = vpack.c.bf16 %v1131, %v1130
          %v1153 = vpack.c.bf16 %v1133, %v1132
          %v1154 = vpack.c.bf16 %v1135, %v1134
          %v1155 = vpack.c.bf16 %v1137, %v1136
          %v1156 = vpack.c.bf16 %v1139, %v1138
          %v1157 = vpack.c.bf16 %v1141, %v1140
          %v1158 = vld [vmem:[#allocation6] sm:$0xf]
          %v1159 = vld [vmem:[#allocation6 + $0x4] sm:$0xf]
          %v1160 = vld [vmem:[#allocation6 + $0x8] sm:$0xf]
          %v1161 = vld [vmem:[#allocation6 + $0xc] sm:$0xf]
          %v1162 = vld [vmem:[#allocation6 + $0x10] sm:$0xf]
          %v1163 = vld [vmem:[#allocation6 + $0x14] sm:$0xf]
          %v1164 = vld [vmem:[#allocation6 + $0x18] sm:$0xf]
          %v1165 = vld [vmem:[#allocation6 + $0x1c] sm:$0xf]
          %v1166 = vld [vmem:[#allocation6 + $0x20] sm:$0xf]
          %v1167 = vld [vmem:[#allocation6 + $0x24] sm:$0xf]
          %v1168 = vld [vmem:[#allocation6 + $0x28] sm:$0xf]
          %v1169 = vld [vmem:[#allocation6 + $0x2c] sm:$0xf]
          %v1170 = vld [vmem:[#allocation6 + $0x30] sm:$0xf]
          %v1171 = vld [vmem:[#allocation6 + $0x34] sm:$0xf]
          %v1172 = vld [vmem:[#allocation6 + $0x38] sm:$0xf]
          %v1173 = vld [vmem:[#allocation6 + $0x3c] sm:$0xf]
          %v1174 = vld [vmem:[%s403] sm:$0xf]
          %v1175 = vld [vmem:[%s403 + $0x4] sm:$0xf]
          %v1176 = vld [vmem:[%s403 + $0x8] sm:$0xf]
          %v1177 = vld [vmem:[%s403 + $0xc] sm:$0xf]
          %v1178 = vld [vmem:[%s403 + $0x10] sm:$0xf]
          %v1179 = vld [vmem:[%s403 + $0x14] sm:$0xf]
          %v1180 = vld [vmem:[%s403 + $0x18] sm:$0xf]
          %v1181 = vld [vmem:[%s403 + $0x1c] sm:$0xf]
          %v1182 = vld [vmem:[%s403 + $0x20] sm:$0xf]
          %v1183 = vld [vmem:[%s403 + $0x24] sm:$0xf]
          %v1184 = vld [vmem:[%s403 + $0x28] sm:$0xf]
          %v1185 = vld [vmem:[%s403 + $0x2c] sm:$0xf]
          %v1186 = vld [vmem:[%s403 + $0x30] sm:$0xf]
          %v1187 = vld [vmem:[%s403 + $0x34] sm:$0xf]
          %v1188 = vld [vmem:[%s403 + $0x38] sm:$0xf]
          %v1189 = vld [vmem:[%s403 + $0x3c] sm:$0xf]
          %v1190 = vld [vmem:[%s403 + $0x40] sm:$0xf]
          %v1191 = vld [vmem:[%s403 + $0x44] sm:$0xf]
          %v1192 = vld [vmem:[%s403 + $0x48] sm:$0xf]
          %v1193 = vld [vmem:[%s403 + $0x4c] sm:$0xf]
          %v1194 = vld [vmem:[%s403 + $0x50] sm:$0xf]
          %v1195 = vld [vmem:[%s403 + $0x54] sm:$0xf]
          %v1196 = vld [vmem:[%s403 + $0x58] sm:$0xf]
          %v1197 = vld [vmem:[%s403 + $0x5c] sm:$0xf]
          %v1198 = vld [vmem:[%s403 + $0x60] sm:$0xf]
          %v1199 = vld [vmem:[%s403 + $0x64] sm:$0xf]
          %v1200 = vld [vmem:[%s403 + $0x68] sm:$0xf]
          %v1201 = vld [vmem:[%s403 + $0x6c] sm:$0xf]
          %v1202 = vld [vmem:[%s403 + $0x70] sm:$0xf]
          %v1203 = vld [vmem:[%s403 + $0x74] sm:$0xf]
          %v1204 = vld [vmem:[%s403 + $0x78] sm:$0xf]
          %v1205 = vld [vmem:[%s403 + $0x7c] sm:$0xf]
          %v1206 = vld [vmem:[#allocation8] sm:$0xf]
          %v1207 = vld [vmem:[#allocation8 + $0x4] sm:$0xf]
          %v1208 = vld [vmem:[#allocation8 + $0x8] sm:$0xf]
          %v1209 = vld [vmem:[#allocation8 + $0xc] sm:$0xf]
          %v1210 = vld [vmem:[#allocation8 + $0x10] sm:$0xf]
          %v1211 = vld [vmem:[#allocation8 + $0x14] sm:$0xf]
          %v1212 = vld [vmem:[#allocation8 + $0x18] sm:$0xf]
          %v1213 = vld [vmem:[#allocation8 + $0x1c] sm:$0xf]
          %v1214 = vld [vmem:[#allocation8 + $0x20] sm:$0xf]
          %v1215 = vld [vmem:[#allocation8 + $0x24] sm:$0xf]
          %v1216 = vld [vmem:[#allocation8 + $0x28] sm:$0xf]
          %v1217 = vld [vmem:[#allocation8 + $0x2c] sm:$0xf]
          %v1218 = vld [vmem:[#allocation8 + $0x30] sm:$0xf]
          %v1219 = vld [vmem:[#allocation8 + $0x34] sm:$0xf]
          %v1220 = vld [vmem:[#allocation8 + $0x38] sm:$0xf]
          %v1221 = vld [vmem:[#allocation8 + $0x3c] sm:$0xf]
          %v1254 = vunpack.c.l.b16 %v1174
          %v1255 = vunpack.c.l.b16 %v1175
          %v1256 = vunpack.c.l.b16 %v1176
          %v1257 = vunpack.c.l.b16 %v1177
          %v1258 = vunpack.c.l.b16 %v1178
          %v1259 = vunpack.c.l.b16 %v1179
          %v1260 = vunpack.c.l.b16 %v1180
          %v1261 = vunpack.c.l.b16 %v1181
          %v1262 = vunpack.c.l.b16 %v1182
          %v1263 = vunpack.c.l.b16 %v1183
          %v1264 = vunpack.c.l.b16 %v1184
          %v1265 = vunpack.c.l.b16 %v1185
          %v1266 = vunpack.c.l.b16 %v1186
          %v1267 = vunpack.c.l.b16 %v1187
          %v1268 = vunpack.c.l.b16 %v1188
          %v1269 = vunpack.c.l.b16 %v1189
          %v1270 = vunpack.c.l.b16 %v1190
          %v1271 = vunpack.c.l.b16 %v1191
          %v1272 = vunpack.c.l.b16 %v1192
          %v1273 = vunpack.c.l.b16 %v1193
          %v1274 = vunpack.c.l.b16 %v1194
          %v1275 = vunpack.c.l.b16 %v1195
          %v1276 = vunpack.c.l.b16 %v1196
          %v1277 = vunpack.c.l.b16 %v1197
          %v1278 = vunpack.c.l.b16 %v1198
          %v1279 = vunpack.c.l.b16 %v1199
          %v1280 = vunpack.c.l.b16 %v1200
          %v1281 = vunpack.c.l.b16 %v1201
          %v1282 = vunpack.c.l.b16 %v1202
          %v1283 = vunpack.c.l.b16 %v1203
          %v1284 = vunpack.c.l.b16 %v1204
          %v1285 = vunpack.c.l.b16 %v1205
          %v1286 = vpack.c.b16 %v1255, %v1254
          %v1287 = vpack.c.b16 %v1257, %v1256
          %v1288 = vpack.c.b16 %v1259, %v1258
          %v1289 = vpack.c.b16 %v1261, %v1260
          %v1290 = vpack.c.b16 %v1263, %v1262
          %v1291 = vpack.c.b16 %v1265, %v1264
          %v1292 = vpack.c.b16 %v1267, %v1266
          %v1293 = vpack.c.b16 %v1269, %v1268
          %v1294 = vpack.c.b16 %v1271, %v1270
          %v1295 = vpack.c.b16 %v1273, %v1272
          %v1296 = vpack.c.b16 %v1275, %v1274
          %v1297 = vpack.c.b16 %v1277, %v1276
          %v1298 = vpack.c.b16 %v1279, %v1278
          %v1299 = vpack.c.b16 %v1281, %v1280
          %v1300 = vpack.c.b16 %v1283, %v1282
          %v1301 = vpack.c.b16 %v1285, %v1284
          %v1334 = vunpack.c.l.b16 %v1206
          %v1335 = vunpack.c.l.b16 %v1207
          %v1336 = vunpack.c.l.b16 %v1208
          %v1337 = vunpack.c.l.b16 %v1209
          %v1338 = vunpack.c.l.b16 %v1210
          %v1339 = vunpack.c.l.b16 %v1211
          %v1340 = vunpack.c.l.b16 %v1212
          %v1341 = vunpack.c.l.b16 %v1213
          %v1342 = vunpack.c.l.b16 %v1214
          %v1343 = vunpack.c.l.b16 %v1215
          %v1344 = vunpack.c.l.b16 %v1216
          %v1345 = vunpack.c.l.b16 %v1217
          %v1346 = vunpack.c.l.b16 %v1218
          %v1347 = vunpack.c.l.b16 %v1219
          %v1348 = vunpack.c.l.b16 %v1220
          %v1349 = vunpack.c.l.b16 %v1221
          %v1350 = vpack.c.b16 %v1335, %v1334
          %v1351 = vpack.c.b16 %v1337, %v1336
          %v1352 = vpack.c.b16 %v1339, %v1338
          %v1353 = vpack.c.b16 %v1341, %v1340
          %v1354 = vpack.c.b16 %v1343, %v1342
          %v1355 = vpack.c.b16 %v1345, %v1344
          %v1356 = vpack.c.b16 %v1347, %v1346
          %v1357 = vpack.c.b16 %v1349, %v1348
          %1366 = vmatprep.subr.bf16.mxu0 0
          %1367 = vmatpush1.bf16.msra.mxu0 %v1350
          %1368 = vmatprep.subr.bf16.mxu0 0
          %1369 = vmatpush1.bf16.msra.mxu0 %v1351
          %1370 = vmatprep.subr.bf16.mxu0 0
          %1371 = vmatpush1.bf16.msra.mxu0 %v1352
          %1372 = vmatprep.subr.bf16.mxu0 0
          %1373 = vmatpush1.bf16.msra.mxu0 %v1353
          %1374 = vmatprep.subr.bf16.mxu0 0
          %1375 = vmatpush1.bf16.msra.mxu0 %v1354
          %1376 = vmatprep.subr.bf16.mxu0 0
          %1377 = vmatpush1.bf16.msra.mxu0 %v1355
          %1378 = vmatprep.subr.bf16.mxu0 0
          %1379 = vmatpush1.bf16.msra.mxu0 %v1356
          %1380 = vmatprep.subr.bf16.mxu0 0
          %1381 = vmatpush1.bf16.msra.mxu0 %v1357
          %1382 = vmatprep.subr.bf16.mxu0 0
          %1383 = vmatpush1.bf16.msra.mxu0 0
          %1384 = vmatprep.subr.bf16.mxu0 0
          %1385 = vmatpush1.bf16.msra.mxu0 0
          %1386 = vmatprep.subr.bf16.mxu0 0
          %1387 = vmatpush1.bf16.msra.mxu0 0
          %1388 = vmatprep.subr.bf16.mxu0 0
          %1389 = vmatpush1.bf16.msra.mxu0 0
          %1390 = vmatprep.subr.bf16.mxu0 0
          %1391 = vmatpush1.bf16.msra.mxu0 0
          %1392 = vmatprep.subr.bf16.mxu0 0
          %1393 = vmatpush1.bf16.msra.mxu0 0
          %1394 = vmatprep.subr.bf16.mxu0 0
          %1395 = vmatpush1.bf16.msra.mxu0 0
          %1396 = vmatprep.subr.bf16.mxu0 0
          %1397 = vmatpush1.bf16.msra.mxu0 0
          %1398 = vmatprep.mubr.bf16.mxu0 0
          %1399 = vmatmul.mubr.bf16.gmra.mrb[0].mxu0 %v1286
          %v1400 = vpop.f32.mrb[0].mxu0
          %v1401 = vadd.f32 0.0, %v1400
          %v1402 = vpop.f32.mrb[0].mxu0
          %v1403 = vpop.f32.mrb[0].mxu0
          %v1404 = vadd.f32 0.0, %v1403
          %v1405 = vpop.f32.mrb[0].mxu0
          %1406 = vmatprep.mubr.bf16.mxu0 0
          %1407 = vmatmul.mubr.bf16.gmra.mrb[0].mxu0 %v1287
          %v1408 = vpop.f32.mrb[0].mxu0
          %v1409 = vadd.f32 0.0, %v1408
          %v1410 = vpop.f32.mrb[0].mxu0
          %v1411 = vpop.f32.mrb[0].mxu0
          %v1412 = vadd.f32 0.0, %v1411
          %v1413 = vpop.f32.mrb[0].mxu0
          %1414 = vmatprep.mubr.bf16.mxu0 0
          %1415 = vmatmul.mubr.bf16.gmra.mrb[0].mxu0 %v1288
          %v1416 = vpop.f32.mrb[0].mxu0
          %v1417 = vadd.f32 0.0, %v1416
          %v1418 = vpop.f32.mrb[0].mxu0
          %v1419 = vpop.f32.mrb[0].mxu0
          %v1420 = vadd.f32 0.0, %v1419
          %v1421 = vpop.f32.mrb[0].mxu0
          %1422 = vmatprep.mubr.bf16.mxu0 0
          %1423 = vmatmul.mubr.bf16.gmra.mrb[0].mxu0 %v1289
          %v1424 = vpop.f32.mrb[0].mxu0
          %v1425 = vadd.f32 0.0, %v1424
          %v1426 = vpop.f32.mrb[0].mxu0
          %v1427 = vpop.f32.mrb[0].mxu0
          %v1428 = vadd.f32 0.0, %v1427
          %v1429 = vpop.f32.mrb[0].mxu0
          %1430 = vmatprep.mubr.bf16.mxu0 0
          %1431 = vmatmul.mubr.bf16.gmra.mrb[0].mxu0 %v1290
          %v1432 = vpop.f32.mrb[0].mxu0
          %v1433 = vadd.f32 0.0, %v1432
          %v1434 = vpop.f32.mrb[0].mxu0
          %v1435 = vpop.f32.mrb[0].mxu0
          %v1436 = vadd.f32 0.0, %v1435
          %v1437 = vpop.f32.mrb[0].mxu0
          %1438 = vmatprep.mubr.bf16.mxu0 0
          %1439 = vmatmul.mubr.bf16.gmra.mrb[0].mxu0 %v1291
          %v1440 = vpop.f32.mrb[0].mxu0
          %v1441 = vadd.f32 0.0, %v1440
          %v1442 = vpop.f32.mrb[0].mxu0
          %v1443 = vpop.f32.mrb[0].mxu0
          %v1444 = vadd.f32 0.0, %v1443
          %v1445 = vpop.f32.mrb[0].mxu0
          %1446 = vmatprep.mubr.bf16.mxu0 0
          %1447 = vmatmul.mubr.bf16.gmra.mrb[0].mxu0 %v1292
          %v1448 = vpop.f32.mrb[0].mxu0
          %v1449 = vadd.f32 0.0, %v1448
          %v1450 = vpop.f32.mrb[0].mxu0
          %v1451 = vpop.f32.mrb[0].mxu0
          %v1452 = vadd.f32 0.0, %v1451
          %v1453 = vpop.f32.mrb[0].mxu0
          %1454 = vmatprep.mubr.bf16.mxu0 0
          %1455 = vmatmul.mubr.bf16.gmra.mrb[0].mxu0 %v1293
          %v1456 = vpop.f32.mrb[0].mxu0
          %v1457 = vadd.f32 0.0, %v1456
          %v1458 = vpop.f32.mrb[0].mxu0
          %v1459 = vpop.f32.mrb[0].mxu0
          %v1460 = vadd.f32 0.0, %v1459
          %v1461 = vpop.f32.mrb[0].mxu0
          %1462 = vmatprep.mubr.bf16.mxu0 0
          %1463 = vmatmul.mubr.bf16.gmra.mrb[0].mxu0 %v1294
          %v1464 = vpop.f32.mrb[0].mxu0
          %v1465 = vadd.f32 0.0, %v1464
          %v1466 = vpop.f32.mrb[0].mxu0
          %v1467 = vpop.f32.mrb[0].mxu0
          %v1468 = vadd.f32 0.0, %v1467
          %v1469 = vpop.f32.mrb[0].mxu0
          %1470 = vmatprep.mubr.bf16.mxu0 0
          %1471 = vmatmul.mubr.bf16.gmra.mrb[0].mxu0 %v1295
          %v1472 = vpop.f32.mrb[0].mxu0
          %v1473 = vadd.f32 0.0, %v1472
          %v1474 = vpop.f32.mrb[0].mxu0
          %v1475 = vpop.f32.mrb[0].mxu0
          %v1476 = vadd.f32 0.0, %v1475
          %v1477 = vpop.f32.mrb[0].mxu0
          %1478 = vmatprep.mubr.bf16.mxu0 0
          %1479 = vmatmul.mubr.bf16.gmra.mrb[0].mxu0 %v1296
          %v1480 = vpop.f32.mrb[0].mxu0
          %v1481 = vadd.f32 0.0, %v1480
          %v1482 = vpop.f32.mrb[0].mxu0
          %v1483 = vpop.f32.mrb[0].mxu0
          %v1484 = vadd.f32 0.0, %v1483
          %v1485 = vpop.f32.mrb[0].mxu0
          %1486 = vmatprep.mubr.bf16.mxu0 0
          %1487 = vmatmul.mubr.bf16.gmra.mrb[0].mxu0 %v1297
          %v1488 = vpop.f32.mrb[0].mxu0
          %v1489 = vadd.f32 0.0, %v1488
          %v1490 = vpop.f32.mrb[0].mxu0
          %v1491 = vpop.f32.mrb[0].mxu0
          %v1492 = vadd.f32 0.0, %v1491
          %v1493 = vpop.f32.mrb[0].mxu0
          %1494 = vmatprep.mubr.bf16.mxu0 0
          %1495 = vmatmul.mubr.bf16.gmra.mrb[0].mxu0 %v1298
          %v1496 = vpop.f32.mrb[0].mxu0
          %v1497 = vadd.f32 0.0, %v1496
          %v1498 = vpop.f32.mrb[0].mxu0
          %v1499 = vpop.f32.mrb[0].mxu0
          %v1500 = vadd.f32 0.0, %v1499
          %v1501 = vpop.f32.mrb[0].mxu0
          %1502 = vmatprep.mubr.bf16.mxu0 0
          %1503 = vmatmul.mubr.bf16.gmra.mrb[0].mxu0 %v1299
          %v1504 = vpop.f32.mrb[0].mxu0
          %v1505 = vadd.f32 0.0, %v1504
          %v1506 = vpop.f32.mrb[0].mxu0
          %v1507 = vpop.f32.mrb[0].mxu0
          %v1508 = vadd.f32 0.0, %v1507
          %v1509 = vpop.f32.mrb[0].mxu0
          %1510 = vmatprep.mubr.bf16.mxu0 0
          %1511 = vmatmul.mubr.bf16.gmra.mrb[0].mxu0 %v1300
          %v1512 = vpop.f32.mrb[0].mxu0
          %v1513 = vadd.f32 0.0, %v1512
          %v1514 = vpop.f32.mrb[0].mxu0
          %v1515 = vpop.f32.mrb[0].mxu0
          %v1516 = vadd.f32 0.0, %v1515
          %v1517 = vpop.f32.mrb[0].mxu0
          %1518 = vmatprep.mubr.bf16.mxu0 0
          %1519 = vmatmul.mubr.bf16.gmra.mrb[0].mxu0 %v1301
          %v1520 = vpop.f32.mrb[0].mxu0
          %v1521 = vadd.f32 0.0, %v1520
          %v1522 = vpop.f32.mrb[0].mxu0
          %v1523 = vpop.f32.mrb[0].mxu0
          %v1524 = vadd.f32 0.0, %v1523
          %v1525 = vpop.f32.mrb[0].mxu0
          %1526 = vdwg.mxu0
          %v1543 = vunpack.c.l.b16 %v1158
          %v1544 = vunpack.c.l.b16 %v1159
          %v1545 = vunpack.c.l.b16 %v1160
          %v1546 = vunpack.c.l.b16 %v1161
          %v1547 = vunpack.c.l.b16 %v1162
          %v1548 = vunpack.c.l.b16 %v1163
          %v1549 = vunpack.c.l.b16 %v1164
          %v1550 = vunpack.c.l.b16 %v1165
          %v1551 = vunpack.c.l.b16 %v1166
          %v1552 = vunpack.c.l.b16 %v1167
          %v1553 = vunpack.c.l.b16 %v1168
          %v1554 = vunpack.c.l.b16 %v1169
          %v1555 = vunpack.c.l.b16 %v1170
          %v1556 = vunpack.c.l.b16 %v1171
          %v1557 = vunpack.c.l.b16 %v1172
          %v1558 = vunpack.c.l.b16 %v1173
          %v1559 = vpack.c.b16 %v1544, %v1543
          %v1560 = vpack.c.b16 %v1546, %v1545
          %v1561 = vpack.c.b16 %v1548, %v1547
          %v1562 = vpack.c.b16 %v1550, %v1549
          %v1563 = vpack.c.b16 %v1552, %v1551
          %v1564 = vpack.c.b16 %v1554, %v1553
          %v1565 = vpack.c.b16 %v1556, %v1555
          %v1566 = vpack.c.b16 %v1558, %v1557
          %1575 = vmatprep.subr.bf16.mxu0 0
          %1576 = vmatpush1.bf16.msra.mxu0 %v1559
          %1577 = vmatprep.subr.bf16.mxu0 0
          %1578 = vmatpush1.bf16.msra.mxu0 %v1560
          %1579 = vmatprep.subr.bf16.mxu0 0
          %1580 = vmatpush1.bf16.msra.mxu0 %v1561
          %1581 = vmatprep.subr.bf16.mxu0 0
          %1582 = vmatpush1.bf16.msra.mxu0 %v1562
          %1583 = vmatprep.subr.bf16.mxu0 0
          %1584 = vmatpush1.bf16.msra.mxu0 %v1563
          %1585 = vmatprep.subr.bf16.mxu0 0
          %1586 = vmatpush1.bf16.msra.mxu0 %v1564
          %1587 = vmatprep.subr.bf16.mxu0 0
          %1588 = vmatpush1.bf16.msra.mxu0 %v1565
          %1589 = vmatprep.subr.bf16.mxu0 0
          %1590 = vmatpush1.bf16.msra.mxu0 %v1566
          %1591 = vmatprep.subr.bf16.mxu0 0
          %1592 = vmatpush1.bf16.msra.mxu0 0
          %1593 = vmatprep.subr.bf16.mxu0 0
          %1594 = vmatpush1.bf16.msra.mxu0 0
          %1595 = vmatprep.subr.bf16.mxu0 0
          %1596 = vmatpush1.bf16.msra.mxu0 0
          %1597 = vmatprep.subr.bf16.mxu0 0
          %1598 = vmatpush1.bf16.msra.mxu0 0
          %1599 = vmatprep.subr.bf16.mxu0 0
          %1600 = vmatpush1.bf16.msra.mxu0 0
          %1601 = vmatprep.subr.bf16.mxu0 0
          %1602 = vmatpush1.bf16.msra.mxu0 0
          %1603 = vmatprep.subr.bf16.mxu0 0
          %1604 = vmatpush1.bf16.msra.mxu0 0
          %1605 = vmatprep.subr.bf16.mxu0 0
          %1606 = vmatpush1.bf16.msra.mxu0 0
          %1607 = vmatprep.mubr.bf16.mxu0 0
          %1608 = vmatmul.mubr.bf16.gmra.mrb[0].mxu0 %v1142
          %v1609 = vpop.f32.mrb[0].mxu0
          %v1610 = vadd.f32 %v1401, %v1609
          %v1611 = vpop.f32.mrb[0].mxu0
          %v1612 = vpop.f32.mrb[0].mxu0
          %v1613 = vadd.f32 %v1404, %v1612
          %v1614 = vpop.f32.mrb[0].mxu0
          %1615 = vmatprep.mubr.bf16.mxu0 0
          %1616 = vmatmul.mubr.bf16.gmra.mrb[0].mxu0 %v1143
          %v1617 = vpop.f32.mrb[0].mxu0
          %v1618 = vadd.f32 %v1409, %v1617
          %v1619 = vpop.f32.mrb[0].mxu0
          %v1620 = vpop.f32.mrb[0].mxu0
          %v1621 = vadd.f32 %v1412, %v1620
          %v1622 = vpop.f32.mrb[0].mxu0
          %1623 = vmatprep.mubr.bf16.mxu0 0
          %1624 = vmatmul.mubr.bf16.gmra.mrb[0].mxu0 %v1144
          %v1625 = vpop.f32.mrb[0].mxu0
          %v1626 = vadd.f32 %v1417, %v1625
          %v1627 = vpop.f32.mrb[0].mxu0
          %v1628 = vpop.f32.mrb[0].mxu0
          %v1629 = vadd.f32 %v1420, %v1628
          %v1630 = vpop.f32.mrb[0].mxu0
          %1631 = vmatprep.mubr.bf16.mxu0 0
          %1632 = vmatmul.mubr.bf16.gmra.mrb[0].mxu0 %v1145
          %v1633 = vpop.f32.mrb[0].mxu0
          %v1634 = vadd.f32 %v1425, %v1633
          %v1635 = vpop.f32.mrb[0].mxu0
          %v1636 = vpop.f32.mrb[0].mxu0
          %v1637 = vadd.f32 %v1428, %v1636
          %v1638 = vpop.f32.mrb[0].mxu0
          %1639 = vmatprep.mubr.bf16.mxu0 0
          %1640 = vmatmul.mubr.bf16.gmra.mrb[0].mxu0 %v1146
          %v1641 = vpop.f32.mrb[0].mxu0
          %v1642 = vadd.f32 %v1433, %v1641
          %v1643 = vpop.f32.mrb[0].mxu0
          %v1644 = vpop.f32.mrb[0].mxu0
          %v1645 = vadd.f32 %v1436, %v1644
          %v1646 = vpop.f32.mrb[0].mxu0
          %1647 = vmatprep.mubr.bf16.mxu0 0
          %1648 = vmatmul.mubr.bf16.gmra.mrb[0].mxu0 %v1147
          %v1649 = vpop.f32.mrb[0].mxu0
          %v1650 = vadd.f32 %v1441, %v1649
          %v1651 = vpop.f32.mrb[0].mxu0
          %v1652 = vpop.f32.mrb[0].mxu0
          %v1653 = vadd.f32 %v1444, %v1652
          %v1654 = vpop.f32.mrb[0].mxu0
          %1655 = vmatprep.mubr.bf16.mxu0 0
          %1656 = vmatmul.mubr.bf16.gmra.mrb[0].mxu0 %v1148
          %v1657 = vpop.f32.mrb[0].mxu0
          %v1658 = vadd.f32 %v1449, %v1657
          %v1659 = vpop.f32.mrb[0].mxu0
          %v1660 = vpop.f32.mrb[0].mxu0
          %v1661 = vadd.f32 %v1452, %v1660
          %v1662 = vpop.f32.mrb[0].mxu0
          %1663 = vmatprep.mubr.bf16.mxu0 0
          %1664 = vmatmul.mubr.bf16.gmra.mrb[0].mxu0 %v1149
          %v1665 = vpop.f32.mrb[0].mxu0
          %v1666 = vadd.f32 %v1457, %v1665
          %v1667 = vpop.f32.mrb[0].mxu0
          %v1668 = vpop.f32.mrb[0].mxu0
          %v1669 = vadd.f32 %v1460, %v1668
          %v1670 = vpop.f32.mrb[0].mxu0
          %1671 = vmatprep.mubr.bf16.mxu0 0
          %1672 = vmatmul.mubr.bf16.gmra.mrb[0].mxu0 %v1150
          %v1673 = vpop.f32.mrb[0].mxu0
          %v1674 = vadd.f32 %v1465, %v1673
          %v1675 = vpop.f32.mrb[0].mxu0
          %v1676 = vpop.f32.mrb[0].mxu0
          %v1677 = vadd.f32 %v1468, %v1676
          %v1678 = vpop.f32.mrb[0].mxu0
          %1679 = vmatprep.mubr.bf16.mxu0 0
          %1680 = vmatmul.mubr.bf16.gmra.mrb[0].mxu0 %v1151
          %v1681 = vpop.f32.mrb[0].mxu0
          %v1682 = vadd.f32 %v1473, %v1681
          %v1683 = vpop.f32.mrb[0].mxu0
          %v1684 = vpop.f32.mrb[0].mxu0
          %v1685 = vadd.f32 %v1476, %v1684
          %v1686 = vpop.f32.mrb[0].mxu0
          %1687 = vmatprep.mubr.bf16.mxu0 0
          %1688 = vmatmul.mubr.bf16.gmra.mrb[0].mxu0 %v1152
          %v1689 = vpop.f32.mrb[0].mxu0
          %v1690 = vadd.f32 %v1481, %v1689
          %v1691 = vpop.f32.mrb[0].mxu0
          %v1692 = vpop.f32.mrb[0].mxu0
          %v1693 = vadd.f32 %v1484, %v1692
          %v1694 = vpop.f32.mrb[0].mxu0
          %1695 = vmatprep.mubr.bf16.mxu0 0
          %1696 = vmatmul.mubr.bf16.gmra.mrb[0].mxu0 %v1153
          %v1697 = vpop.f32.mrb[0].mxu0
          %v1698 = vadd.f32 %v1489, %v1697
          %v1699 = vpop.f32.mrb[0].mxu0
          %v1700 = vpop.f32.mrb[0].mxu0
          %v1701 = vadd.f32 %v1492, %v1700
          %v1702 = vpop.f32.mrb[0].mxu0
          %1703 = vmatprep.mubr.bf16.mxu0 0
          %1704 = vmatmul.mubr.bf16.gmra.mrb[0].mxu0 %v1154
          %v1705 = vpop.f32.mrb[0].mxu0
          %v1706 = vadd.f32 %v1497, %v1705
          %v1707 = vpop.f32.mrb[0].mxu0
          %v1708 = vpop.f32.mrb[0].mxu0
          %v1709 = vadd.f32 %v1500, %v1708
          %v1710 = vpop.f32.mrb[0].mxu0
          %1711 = vmatprep.mubr.bf16.mxu0 0
          %1712 = vmatmul.mubr.bf16.gmra.mrb[0].mxu0 %v1155
          %v1713 = vpop.f32.mrb[0].mxu0
          %v1714 = vadd.f32 %v1505, %v1713
          %v1715 = vpop.f32.mrb[0].mxu0
          %v1716 = vpop.f32.mrb[0].mxu0
          %v1717 = vadd.f32 %v1508, %v1716
          %v1718 = vpop.f32.mrb[0].mxu0
          %1719 = vmatprep.mubr.bf16.mxu0 0
          %1720 = vmatmul.mubr.bf16.gmra.mrb[0].mxu0 %v1156
          %v1721 = vpop.f32.mrb[0].mxu0
          %v1722 = vadd.f32 %v1513, %v1721
          %v1723 = vpop.f32.mrb[0].mxu0
          %v1724 = vpop.f32.mrb[0].mxu0
          %v1725 = vadd.f32 %v1516, %v1724
          %v1726 = vpop.f32.mrb[0].mxu0
          %1727 = vmatprep.mubr.bf16.mxu0 0
          %1728 = vmatmul.mubr.bf16.gmra.mrb[0].mxu0 %v1157
          %v1729 = vpop.f32.mrb[0].mxu0
          %v1730 = vadd.f32 %v1521, %v1729
          %v1731 = vpop.f32.mrb[0].mxu0
          %v1732 = vpop.f32.mrb[0].mxu0
          %v1733 = vadd.f32 %v1524, %v1732
          %v1734 = vpop.f32.mrb[0].mxu0
          %1735 = vdwg.mxu0
          %v1736 = vld [vmem:[%s6] sm:$0x1]
          %v1738 = vlaneseq
          %v1739 = vshrl.u32 %v1738, 7
          %v1740 = vsub.s32 0, %v1739
          %v1741 = vrot.slane %v1736, %v1740
          %v1743 = vadd.f32 %v1610, %v1741
          %v1744 = vadd.f32 %v1613, %v1741
          %v1745 = vadd.f32 %v1618, %v1741
          %v1746 = vadd.f32 %v1621, %v1741
          %v1747 = vadd.f32 %v1626, %v1741
          %v1748 = vadd.f32 %v1629, %v1741
          %v1749 = vadd.f32 %v1634, %v1741
          %v1750 = vadd.f32 %v1637, %v1741
          %v1751 = vadd.f32 %v1642, %v1741
          %v1752 = vadd.f32 %v1645, %v1741
          %v1753 = vadd.f32 %v1650, %v1741
          %v1754 = vadd.f32 %v1653, %v1741
          %v1755 = vadd.f32 %v1658, %v1741
          %v1756 = vadd.f32 %v1661, %v1741
          %v1757 = vadd.f32 %v1666, %v1741
          %v1758 = vadd.f32 %v1669, %v1741
          %v1759 = vadd.f32 %v1674, %v1741
          %v1760 = vadd.f32 %v1677, %v1741
          %v1761 = vadd.f32 %v1682, %v1741
          %v1762 = vadd.f32 %v1685, %v1741
          %v1763 = vadd.f32 %v1690, %v1741
          %v1764 = vadd.f32 %v1693, %v1741
          %v1765 = vadd.f32 %v1698, %v1741
          %v1766 = vadd.f32 %v1701, %v1741
          %v1767 = vadd.f32 %v1706, %v1741
          %v1768 = vadd.f32 %v1709, %v1741
          %v1769 = vadd.f32 %v1714, %v1741
          %v1770 = vadd.f32 %v1717, %v1741
          %v1771 = vadd.f32 %v1722, %v1741
          %v1772 = vadd.f32 %v1725, %v1741
          %v1773 = vadd.f32 %v1730, %v1741
          %v1774 = vadd.f32 %v1733, %v1741
          %vm1775 = vcmp.gt.f32.partialorder %v1743, 0.0
          %vm1776 = vcmp.gt.f32.partialorder %v1744, 0.0
          %vm1777 = vcmp.gt.f32.partialorder %v1745, 0.0
          %vm1778 = vcmp.gt.f32.partialorder %v1746, 0.0
          %vm1779 = vcmp.gt.f32.partialorder %v1747, 0.0
          %vm1780 = vcmp.gt.f32.partialorder %v1748, 0.0
          %vm1781 = vcmp.gt.f32.partialorder %v1749, 0.0
          %vm1782 = vcmp.gt.f32.partialorder %v1750, 0.0
          %vm1783 = vcmp.gt.f32.partialorder %v1751, 0.0
          %vm1784 = vcmp.gt.f32.partialorder %v1752, 0.0
          %vm1785 = vcmp.gt.f32.partialorder %v1753, 0.0
          %vm1786 = vcmp.gt.f32.partialorder %v1754, 0.0
          %vm1787 = vcmp.gt.f32.partialorder %v1755, 0.0
          %vm1788 = vcmp.gt.f32.partialorder %v1756, 0.0
          %vm1789 = vcmp.gt.f32.partialorder %v1757, 0.0
          %vm1790 = vcmp.gt.f32.partialorder %v1758, 0.0
          %vm1791 = vcmp.gt.f32.partialorder %v1759, 0.0
          %vm1792 = vcmp.gt.f32.partialorder %v1760, 0.0
          %vm1793 = vcmp.gt.f32.partialorder %v1761, 0.0
          %vm1794 = vcmp.gt.f32.partialorder %v1762, 0.0
          %vm1795 = vcmp.gt.f32.partialorder %v1763, 0.0
          %vm1796 = vcmp.gt.f32.partialorder %v1764, 0.0
          %vm1797 = vcmp.gt.f32.partialorder %v1765, 0.0
          %vm1798 = vcmp.gt.f32.partialorder %v1766, 0.0
          %vm1799 = vcmp.gt.f32.partialorder %v1767, 0.0
          %vm1800 = vcmp.gt.f32.partialorder %v1768, 0.0
          %vm1801 = vcmp.gt.f32.partialorder %v1769, 0.0
          %vm1802 = vcmp.gt.f32.partialorder %v1770, 0.0
          %vm1803 = vcmp.gt.f32.partialorder %v1771, 0.0
          %vm1804 = vcmp.gt.f32.partialorder %v1772, 0.0
          %vm1805 = vcmp.gt.f32.partialorder %v1773, 0.0
          %vm1806 = vcmp.gt.f32.partialorder %v1774, 0.0
          %v1807 = vmul.f32 %v1743, 0.01
          %v1808 = vmul.f32 %v1744, 0.01
          %v1809 = vmul.f32 %v1745, 0.01
          %v1810 = vmul.f32 %v1746, 0.01
          %v1811 = vmul.f32 %v1747, 0.01
          %v1812 = vmul.f32 %v1748, 0.01
          %v1813 = vmul.f32 %v1749, 0.01
          %v1814 = vmul.f32 %v1750, 0.01
          %v1815 = vmul.f32 %v1751, 0.01
          %v1816 = vmul.f32 %v1752, 0.01
          %v1817 = vmul.f32 %v1753, 0.01
          %v1818 = vmul.f32 %v1754, 0.01
          %v1819 = vmul.f32 %v1755, 0.01
          %v1820 = vmul.f32 %v1756, 0.01
          %v1821 = vmul.f32 %v1757, 0.01
          %v1822 = vmul.f32 %v1758, 0.01
          %v1823 = vmul.f32 %v1759, 0.01
          %v1824 = vmul.f32 %v1760, 0.01
          %v1825 = vmul.f32 %v1761, 0.01
          %v1826 = vmul.f32 %v1762, 0.01
          %v1827 = vmul.f32 %v1763, 0.01
          %v1828 = vmul.f32 %v1764, 0.01
          %v1829 = vmul.f32 %v1765, 0.01
          %v1830 = vmul.f32 %v1766, 0.01
          %v1831 = vmul.f32 %v1767, 0.01
          %v1832 = vmul.f32 %v1768, 0.01
          %v1833 = vmul.f32 %v1769, 0.01
          %v1834 = vmul.f32 %v1770, 0.01
          %v1835 = vmul.f32 %v1771, 0.01
          %v1836 = vmul.f32 %v1772, 0.01
          %v1837 = vmul.f32 %v1773, 0.01
          %v1838 = vmul.f32 %v1774, 0.01
          %v1839 = vsel %vm1775, %v1743, %v1807
          %v1840 = vsel %vm1776, %v1744, %v1808
          %v1841 = vsel %vm1777, %v1745, %v1809
          %v1842 = vsel %vm1778, %v1746, %v1810
          %v1843 = vsel %vm1779, %v1747, %v1811
          %v1844 = vsel %vm1780, %v1748, %v1812
          %v1845 = vsel %vm1781, %v1749, %v1813
          %v1846 = vsel %vm1782, %v1750, %v1814
          %v1847 = vsel %vm1783, %v1751, %v1815
          %v1848 = vsel %vm1784, %v1752, %v1816
          %v1849 = vsel %vm1785, %v1753, %v1817
          %v1850 = vsel %vm1786, %v1754, %v1818
          %v1851 = vsel %vm1787, %v1755, %v1819
          %v1852 = vsel %vm1788, %v1756, %v1820
          %v1853 = vsel %vm1789, %v1757, %v1821
          %v1854 = vsel %vm1790, %v1758, %v1822
          %v1855 = vsel %vm1791, %v1759, %v1823
          %v1856 = vsel %vm1792, %v1760, %v1824
          %v1857 = vsel %vm1793, %v1761, %v1825
          %v1858 = vsel %vm1794, %v1762, %v1826
          %v1859 = vsel %vm1795, %v1763, %v1827
          %v1860 = vsel %vm1796, %v1764, %v1828
          %v1861 = vsel %vm1797, %v1765, %v1829
          %v1862 = vsel %vm1798, %v1766, %v1830
          %v1863 = vsel %vm1799, %v1767, %v1831
          %v1864 = vsel %vm1800, %v1768, %v1832
          %v1865 = vsel %vm1801, %v1769, %v1833
          %v1866 = vsel %vm1802, %v1770, %v1834
          %v1867 = vsel %vm1803, %v1771, %v1835
          %v1868 = vsel %vm1804, %v1772, %v1836
          %v1869 = vsel %vm1805, %v1773, %v1837
          %v1870 = vsel %vm1806, %v1774, %v1838
          %v1871 = vpack.c.bf16 %v1840, %v1839
          %v1872 = vpack.c.bf16 %v1842, %v1841
          %v1873 = vpack.c.bf16 %v1844, %v1843
          %v1874 = vpack.c.bf16 %v1846, %v1845
          %v1875 = vpack.c.bf16 %v1848, %v1847
          %v1876 = vpack.c.bf16 %v1850, %v1849
          %v1877 = vpack.c.bf16 %v1852, %v1851
          %v1878 = vpack.c.bf16 %v1854, %v1853
          %v1879 = vpack.c.bf16 %v1856, %v1855
          %v1880 = vpack.c.bf16 %v1858, %v1857
          %v1881 = vpack.c.bf16 %v1860, %v1859
          %v1882 = vpack.c.bf16 %v1862, %v1861
          %v1883 = vpack.c.bf16 %v1864, %v1863
          %v1884 = vpack.c.bf16 %v1866, %v1865
          %v1885 = vpack.c.bf16 %v1868, %v1867
          %v1886 = vpack.c.bf16 %v1870, %v1869
          %v1903 = vunpack.c.l.b16 %v1871
          %v1904 = vunpack.c.h.b16 %v1871
          %v1905 = vunpack.c.l.b16 %v1872
          %v1906 = vunpack.c.h.b16 %v1872
          %v1907 = vunpack.c.l.b16 %v1873
          %v1908 = vunpack.c.h.b16 %v1873
          %v1909 = vunpack.c.l.b16 %v1874
          %v1910 = vunpack.c.h.b16 %v1874
          %v1911 = vunpack.c.l.b16 %v1875
          %v1912 = vunpack.c.h.b16 %v1875
          %v1913 = vunpack.c.l.b16 %v1876
          %v1914 = vunpack.c.h.b16 %v1876
          %v1915 = vunpack.c.l.b16 %v1877
          %v1916 = vunpack.c.h.b16 %v1877
          %v1917 = vunpack.c.l.b16 %v1878
          %v1918 = vunpack.c.h.b16 %v1878
          %v1919 = vunpack.c.l.b16 %v1879
          %v1920 = vunpack.c.h.b16 %v1879
          %v1921 = vunpack.c.l.b16 %v1880
          %v1922 = vunpack.c.h.b16 %v1880
          %v1923 = vunpack.c.l.b16 %v1881
          %v1924 = vunpack.c.h.b16 %v1881
          %v1925 = vunpack.c.l.b16 %v1882
          %v1926 = vunpack.c.h.b16 %v1882
          %v1927 = vunpack.c.l.b16 %v1883
          %v1928 = vunpack.c.h.b16 %v1883
          %v1929 = vunpack.c.l.b16 %v1884
          %v1930 = vunpack.c.h.b16 %v1884
          %v1931 = vunpack.c.l.b16 %v1885
          %v1932 = vunpack.c.h.b16 %v1885
          %v1933 = vunpack.c.l.b16 %v1886
          %v1934 = vunpack.c.h.b16 %v1886
          %v1935 = vpack.c.b16 %v1903, %v1903
          %v1936 = vpack.c.b16 %v1904, %v1904
          %v1937 = vpack.c.b16 %v1905, %v1905
          %v1938 = vpack.c.b16 %v1906, %v1906
          %v1939 = vpack.c.b16 %v1907, %v1907
          %v1940 = vpack.c.b16 %v1908, %v1908
          %v1941 = vpack.c.b16 %v1909, %v1909
          %v1942 = vpack.c.b16 %v1910, %v1910
          %v1943 = vpack.c.b16 %v1911, %v1911
          %v1944 = vpack.c.b16 %v1912, %v1912
          %v1945 = vpack.c.b16 %v1913, %v1913
          %v1946 = vpack.c.b16 %v1914, %v1914
          %v1947 = vpack.c.b16 %v1915, %v1915
          %v1948 = vpack.c.b16 %v1916, %v1916
          %v1949 = vpack.c.b16 %v1917, %v1917
          %v1950 = vpack.c.b16 %v1918, %v1918
          %v1951 = vpack.c.b16 %v1919, %v1919
          %v1952 = vpack.c.b16 %v1920, %v1920
          %v1953 = vpack.c.b16 %v1921, %v1921
          %v1954 = vpack.c.b16 %v1922, %v1922
          %v1955 = vpack.c.b16 %v1923, %v1923
          %v1956 = vpack.c.b16 %v1924, %v1924
          %v1957 = vpack.c.b16 %v1925, %v1925
          %v1958 = vpack.c.b16 %v1926, %v1926
          %v1959 = vpack.c.b16 %v1927, %v1927
          %v1960 = vpack.c.b16 %v1928, %v1928
          %v1961 = vpack.c.b16 %v1929, %v1929
          %v1962 = vpack.c.b16 %v1930, %v1930
          %v1963 = vpack.c.b16 %v1931, %v1931
          %v1964 = vpack.c.b16 %v1932, %v1932
          %v1965 = vpack.c.b16 %v1933, %v1933
          %v1966 = vpack.c.b16 %v1934, %v1934
          %1999 = vst [vmem:[%s390] sm:$0xf] %v1935
          %2000 = vst [vmem:[%s390 + $0x4] sm:$0xf] %v1936
          %2001 = vst [vmem:[%s390 + $0x8] sm:$0xf] %v1937
          %2002 = vst [vmem:[%s390 + $0xc] sm:$0xf] %v1938
          %2003 = vst [vmem:[%s390 + $0x10] sm:$0xf] %v1939
          %2004 = vst [vmem:[%s390 + $0x14] sm:$0xf] %v1940
          %2005 = vst [vmem:[%s390 + $0x18] sm:$0xf] %v1941
          %2006 = vst [vmem:[%s390 + $0x1c] sm:$0xf] %v1942
          %2007 = vst [vmem:[%s390 + $0x20] sm:$0xf] %v1943
          %2008 = vst [vmem:[%s390 + $0x24] sm:$0xf] %v1944
          %2009 = vst [vmem:[%s390 + $0x28] sm:$0xf] %v1945
          %2010 = vst [vmem:[%s390 + $0x2c] sm:$0xf] %v1946
          %2011 = vst [vmem:[%s390 + $0x30] sm:$0xf] %v1947
          %2012 = vst [vmem:[%s390 + $0x34] sm:$0xf] %v1948
          %2013 = vst [vmem:[%s390 + $0x38] sm:$0xf] %v1949
          %2014 = vst [vmem:[%s390 + $0x3c] sm:$0xf] %v1950
          %2015 = vst [vmem:[%s390 + $0x40] sm:$0xf] %v1951
          %2016 = vst [vmem:[%s390 + $0x44] sm:$0xf] %v1952
          %2017 = vst [vmem:[%s390 + $0x48] sm:$0xf] %v1953
          %2018 = vst [vmem:[%s390 + $0x4c] sm:$0xf] %v1954
          %2019 = vst [vmem:[%s390 + $0x50] sm:$0xf] %v1955
          %2020 = vst [vmem:[%s390 + $0x54] sm:$0xf] %v1956
          %2021 = vst [vmem:[%s390 + $0x58] sm:$0xf] %v1957
          %2022 = vst [vmem:[%s390 + $0x5c] sm:$0xf] %v1958
          %2023 = vst [vmem:[%s390 + $0x60] sm:$0xf] %v1959
          %2024 = vst [vmem:[%s390 + $0x64] sm:$0xf] %v1960
          %2025 = vst [vmem:[%s390 + $0x68] sm:$0xf] %v1961
          %2026 = vst [vmem:[%s390 + $0x6c] sm:$0xf] %v1962
          %2027 = vst [vmem:[%s390 + $0x70] sm:$0xf] %v1963
          %2028 = vst [vmem:[%s390 + $0x74] sm:$0xf] %v1964
          %2029 = vst [vmem:[%s390 + $0x78] sm:$0xf] %v1965
          %2030 = vst [vmem:[%s390 + $0x7c] sm:$0xf] %v1966
        $region68: #{tpu_custom_call.1} parent=47 // pred_fallthru
          _
        %s2031 = sand.u32 %s214, 1
        %s2032 = scalar_lea.sflag [#allocation5], %s2031
        %s2033 = sand.u32 %s214, 1
        %s2034 = smul.addr %s2033, 128
        %s2035 = scalar_lea.vmem [#allocation9], %s2034
        // Predicated region
        $region69: #{tpu_custom_call.1} parent=47 // pred_check
          %p2036 = pneg %p224
        $region70: #{tpu_custom_call.1} parent=47 // pred_check_branch
          %2038 = sbr.rel (%p2036) target = $region72
        $region71: #{tpu_custom_call.1} parent=47 // pred_region
          %s2039 = smul.u32 32, %s29
          %s2041 = ssub.s32 2048, 2048
          %2042 = vsyncadd %s2032, %s2041
          %s2043 = smul.addr %s2039, 64
          %s2044 = scalar_lea.hbm %s7, %s2043
          %s2045 = sshll.u32 %s2035, 4
          %s2046 = int_to_ptr.vmem [resolvable:$true] %s2045
          %2051 = dma.vmem_to_hbm [thread:$0]  %s2046, 2048, %s2044, %s2032, 64, 64, 4
        $region72: #{tpu_custom_call.1} parent=47 // pred_fallthru
          _
      $region48: #{tpu_custom_call.1} parent=5 // pred_fallthru
        _
      %p2052 = scmp.le.s32.totalorder 2, %s20
      // Predicated region
      $region73: #{tpu_custom_call.1} parent=5 // pred_check
        %p2053 = pneg %p2052
      $region74: #{tpu_custom_call.1} parent=5 // pred_check_branch
        %2055 = sbr.rel (%p2053) target = $region76
      $region75: #{tpu_custom_call.1} parent=5 // pred_region
        %s2056 = ssub.s32 %s20, 2
        // Predicated region
        $region77: #{tpu_custom_call.1} parent=75 // pred_check
          %p2057 = pneg %p230
        $region78: #{tpu_custom_call.1} parent=75 // pred_check_branch
          %2059 = sbr.rel (%p2057) target = $region80
        $region79: #{tpu_custom_call.1} parent=75 // pred_region
          %s2060 = sand.u32 %s215, 1
          %s2061 = scalar_lea.sflag [#allocation5], %s2060
          %s2062 = sand.u32 %s215, 1
          %s2063 = smul.addr %s2062, 128
          %s2064 = scalar_lea.vmem [#allocation9], %s2063
          %2065 = dma.done %s2061, 2048
        $region80: #{tpu_custom_call.1} parent=75 // pred_fallthru
          _
      $region76: #{tpu_custom_call.1} parent=5 // pred_fallthru
        _
    $region6: #{tpu_custom_call.1} parent=1 // loop_footer
      %s24 = sadd.s32 1, %s20
    $region7: #{tpu_custom_call.1} parent=1 // loop_footer_branch
      %19 = sbr.rel target = $region3
    $region8: #{tpu_custom_call.1} parent=1 // loop_exit
      _
    %2066 = vsyncpa [#allocation4], 1
    %s2067 = scalar_lea.sflag [#allocation4], 1
    %2068 = vsyncpa %s2067, 1
    %2069 = vsyncpa [#allocation7], 1
    %2070 = vsyncpa [#allocation5], 1
    %s2071 = scalar_lea.sflag [#allocation5], 1
    %2072 = vsyncpa %s2071, 1

</llo_original>
